<compile_context>
chip_gen: v5e
topology: v5e:2x2
jax: 0.10.0
libtpu: 0.0.40
codegen_flags: <defaults>
</compile_context>

<pallas_src>
import functools

import jax
import jax.numpy as jnp
from jax.experimental import pallas as pl
from jax.experimental.pallas import tpu as pltpu

# ---- model hyper-parameters (small, deterministic, synthetic) ----
N_BINS = 32          # mel bins (H_dim of the attentions)
OUT_FEATURES = 16    # output_features
MODEL_SIZE = 32      # model_complexity / model_size
W_SIZE = 2           # attention half-window
WIN = 2 * W_SIZE + 1


# --------------------------------------------------------------------------
# Pallas kernel: one batch *block* per grid step, full sequence in VMEM.
# --------------------------------------------------------------------------
def _model_kernel(spec_ref,      # (Bb, T, nb)
                  w_all_ref,     # (R+1, 4F+4M) packed weights + bias row
                  v_blk_ref,     # (WIN*M, 2*WIN) block-diag score matrices
                  out_ref,       # (Bb, T, 128) packed, lane-dense output
                  *, w_size, feat_dim, model_size, n_bins, dot_dtype):
    Bb, T, nb = spec_ref.shape
    F = feat_dim
    M = model_size
    win = 2 * w_size + 1
    R = max(n_bins, 2 * F)

    def mm(a, b):
        return jnp.dot(a.astype(dot_dtype), b.astype(dot_dtype),
                       preferred_element_type=jnp.float32)

    # ---- unpack the consolidated weight slab (static offsets) --------------
    w_all = w_all_ref[...]
    w_spec = w_all[:nb, 0:F + M]                       # [w_f | w_oa_h]
    w_pad = w_all[:nb, F + M:F + 3 * M]                # [w_oa_e | w_ca_e]
    w_xcat = w_all[:2 * F, F + 3 * M:2 * F + 4 * M]    # [w_ca_h | w_cl_x]
    w_wsum = w_all[:nb, 2 * F + 4 * M:4 * F + 4 * M]   # [w_o1 | w_cl_w]
    bias = w_all[R:R + 1, :]                           # packed bias row
    b_spec = bias[:, 0:F + M]                          # [b_f | b_oa]
    b_xcat = bias[:, F + M:2 * F + 2 * M]              # [b_ca | b_cl]
    b_o1 = bias[:, 2 * F + 2 * M:3 * F + 2 * M]        # b_o1
    v_blk = v_blk_ref[...]                             # (win*M, 2*win)

    spec3 = spec_ref[...]                              # (Bb, T, nb)
    spec = spec3.reshape(Bb * T, nb)

    # In-kernel per-batch zero halo (replaces host-side jnp.pad).
    halo = jnp.zeros((Bb, w_size, nb), jnp.float32)
    pad3 = jnp.concatenate([halo, spec3, halo], axis=1)   # (Bb, T+2w, nb)
    pad = pad3.reshape(Bb * (T + 2 * w_size), nb)

    # ---- fused LHS=spec matmul: [feat | h_proj_onset] (row-parallel) -------
    spec_proj = mm(spec, w_spec) + b_spec               # (Bb*T, F+M)
    feat = spec_proj[:, :F]                              # (Bb*T, F)
    h_o3 = spec_proj[:, F:].reshape(Bb, T, M)

    # ---- fused padded-slab projection, computed ONCE, shifted per window ---
    pad_proj3 = mm(pad, w_pad).reshape(Bb, T + 2 * w_size, 2 * M)
    proj_o3 = pad_proj3[:, :, :M]
    proj_c3 = pad_proj3[:, :, M:]

    # Window slabs of the raw padded spec, materialized once, reused twice.
    slabs = [pad3[:, w:w + T, :].reshape(Bb * T, nb) for w in range(win)]

    # ---------------- onset attention ---------------------------------------
    e_o = jnp.tanh(jnp.concatenate(
        [h_o3 + proj_o3[:, w:w + T, :] for w in range(win)], axis=-1)
    ).reshape(Bb * T, win * M)                           # one wide tanh slab
    s = mm(e_o, v_blk[:, :win])                          # (Bb*T, win)
    s = s - jnp.max(s, axis=-1, keepdims=True)
    p = jnp.exp(s)
    a_on = p * pl.reciprocal(jnp.sum(p, axis=-1, keepdims=True), approx=False)

    weighted_o = a_on[:, 0:1] * slabs[0]
    for w in range(1, win):
        weighted_o = weighted_o + a_on[:, w:w + 1] * slabs[w]
    onset = jax.nn.sigmoid(mm(weighted_o, w_wsum[:, :F]) + b_o1)   # (Bb*T, F)

    # ---------------- combine stack ------------------------------------------
    xcat = jnp.concatenate([feat, onset], axis=-1)       # (Bb*T, 2F)
    xcat_proj = mm(xcat, w_xcat) + b_xcat                # (Bb*T, M+F)
    h_c3 = xcat_proj[:, :M].reshape(Bb, T, M)
    x_lin = xcat_proj[:, M:]

    e_c = jnp.tanh(jnp.concatenate(
        [h_c3 + proj_c3[:, w:w + T, :] for w in range(win)], axis=-1)
    ).reshape(Bb * T, win * M)
    s_c = mm(e_c, v_blk[:, win:])
    s_c = s_c - jnp.max(s_c, axis=-1, keepdims=True)
    p_c = jnp.exp(s_c)
    a_fr = p_c * pl.reciprocal(jnp.sum(p_c, axis=-1, keepdims=True),
                               approx=False)

    weighted_c = a_fr[:, 0:1] * slabs[0]
    for w in range(1, win):
        weighted_c = weighted_c + a_fr[:, w:w + 1] * slabs[w]
    frame = jax.nn.sigmoid(x_lin + mm(weighted_c, w_wsum[:, F:]))  # (Bb*T, F)

    # ---------------- 128-lane-dense packed output ---------------------------
    out_w = out_ref.shape[2]
    parts = [frame, onset, feat, a_fr, a_on]
    used = 3 * F + 2 * win
    if out_w > used:
        parts.append(jnp.zeros((Bb * T, out_w - used), jnp.float32))
    out_ref[...] = jnp.concatenate(parts, axis=-1).reshape(Bb, T, out_w)


# --------------------------------------------------------------------------
# Wrapper: host-side weight packing, specs, pallas_call, output unpacking.
# --------------------------------------------------------------------------
def _block_diag_v(v, win):
    """v: (M, 1) -> (win*M, win) block-diagonal score matrix."""
    M = v.shape[0]
    out = jnp.zeros((win * M, win), v.dtype)
    for w in range(win):
        out = out.at[w * M:(w + 1) * M, w].set(v[:, 0])
    return out


def _pack_weights(params, F, M, nb, win):
    """15 tiny weights/biases -> one column-packed slab + one score slab."""
    R = max(nb, 2 * F)

    def padrows(m):
        return jnp.pad(m, ((0, R - m.shape[0]), (0, 0)))

    w_cols = jnp.concatenate([
        padrows(jnp.concatenate([params["w_f"], params["w_oa_h"]], axis=1)),
        padrows(jnp.concatenate([params["w_oa_e"], params["w_ca_e"]], axis=1)),
        padrows(jnp.concatenate([params["w_ca_h"], params["w_cl_x"]], axis=1)),
        padrows(jnp.concatenate([params["w_o1"], params["w_cl_w"]], axis=1)),
    ], axis=1)                                                   # (R, 4F+4M)
    bias = jnp.concatenate([params["b_f"], params["b_oa"], params["b_ca"],
                            params["b_cl"], params["b_o1"]], axis=1)
    bias_row = jnp.pad(bias, ((0, 0), (0, w_cols.shape[1] - bias.shape[1])))
    w_all = jnp.concatenate([w_cols, bias_row], axis=0)          # (R+1, 4F+4M)

    v_blk = jnp.concatenate([_block_diag_v(params["w_ov"], win),
                             _block_diag_v(params["w_cv"], win)], axis=1)
    return w_all, v_blk


def _choose_batch_block(B, T):
    """Fold batches until ~256 rows/step, but keep >=2 grid steps (v7x)."""
    target = max(1, 256 // max(T, 1))
    min_grid = 2 if B >= 2 else 1
    best = 1
    for d in range(1, B + 1):
        if B % d == 0 and d <= target and B // d >= min_grid:
            best = d
    return best


def simple_model_onset(spec, params, w_size=W_SIZE, batch_block=None,
                       dot_dtype=jnp.float32):
    B, T, nb = spec.shape
    win = 2 * w_size + 1
    F = params["w_f"].shape[1]
    M = params["w_oa_h"].shape[1]

    w_all, v_blk = _pack_weights(params, F, M, nb, win)

    Bb = batch_block if batch_block is not None else _choose_batch_block(B, T)
    assert B % Bb == 0, (B, Bb)

    used = 3 * F + 2 * win
    out_w = max(128, ((used + 127) // 128) * 128)     # 128-lane-dense packed

    kernel = functools.partial(_model_kernel, w_size=w_size, feat_dim=F,
                               model_size=M, n_bins=nb, dot_dtype=dot_dtype)

    packed = pl.pallas_call(
        kernel,
        out_shape=jax.ShapeDtypeStruct((B, T, out_w), jnp.float32),
        grid=(B // Bb,),
        in_specs=[
            pl.BlockSpec((Bb, T, nb), lambda b: (b, 0, 0)),
            pl.BlockSpec(w_all.shape, lambda b: (0, 0)),
            pl.BlockSpec(v_blk.shape, lambda b: (0, 0)),
        ],
        out_specs=pl.BlockSpec((Bb, T, out_w), lambda b: (b, 0, 0)),
        compiler_params=pltpu.CompilerParams(
            dimension_semantics=("parallel",)),
    )(spec, w_all, v_blk)

    frame = packed[:, :, 0:F]
    onset = packed[:, :, F:2 * F]
    feat = packed[:, :, 2 * F:3 * F]
    a_frame = packed[:, :, 3 * F:3 * F + win][:, :, None, :]
    a_onset = packed[:, :, 3 * F + win:3 * F + 2 * win][:, :, None, :]
    return frame, a_frame, onset, a_onset, feat


# --------------------------------------------------------------------------
# Deterministic parameter init (nn.Linear-style uniform(-1/sqrt(fan_in), ...))
# --------------------------------------------------------------------------
def init_params(key):
    F, M, nb = OUT_FEATURES, MODEL_SIZE, N_BINS
    ks = jax.random.split(key, 16)

    def u(k, shape, fan_in):
        b = 1.0 / float(fan_in) ** 0.5
        return jax.random.uniform(k, shape, jnp.float32, -b, b)

    return {
        # frame_stack: Linear(N_BINS, F)
        "w_f": u(ks[0], (nb, F), nb), "b_f": u(ks[1], (1, F), nb),
        # onset attention: Linear(N_BINS + N_BINS, M) split into hidden/enc
        "w_oa_h": u(ks[2], (nb, M), 2 * nb),
        "w_oa_e": u(ks[3], (nb, M), 2 * nb),
        "b_oa": u(ks[4], (1, M), 2 * nb),
        "w_ov": u(ks[5], (M, 1), M),
        # onset linear1: Linear(N_BINS, F)
        "w_o1": u(ks[6], (nb, F), nb), "b_o1": u(ks[7], (1, F), nb),
        # combine attention: Linear(2F + N_BINS, M) split into hidden/enc
        "w_ca_h": u(ks[8], (2 * F, M), 2 * F + nb),
        "w_ca_e": u(ks[9], (nb, M), 2 * F + nb),
        "b_ca": u(ks[10], (1, M), 2 * F + nb),
        "w_cv": u(ks[11], (M, 1), M),
        # combine linear: Linear(2F + N_BINS, F) split into x/weighted
        "w_cl_x": u(ks[12], (2 * F, F), 2 * F + nb),
        "w_cl_w": u(ks[13], (nb, F), 2 * F + nb),
        "b_cl": u(ks[14], (1, F), 2 * F + nb),
    }


# --------------------------------------------------------------------------
# Pure-JAX reference (same math) for a correctness check.
# --------------------------------------------------------------------------
def reference(spec, p, w_size=W_SIZE):
    B, T, nb = spec.shape
    win = 2 * w_size + 1
    pad = jnp.pad(spec, ((0, 0), (w_size, w_size), (0, 0)))
    windowed = jnp.stack([pad[:, w:w + T, :] for w in range(win)], axis=2)

    feat = spec @ p["w_f"] + p["b_f"]

    h = spec @ p["w_oa_h"] + p["b_oa"]
    e = jnp.tanh(h[:, :, None, :] + windowed @ p["w_oa_e"])
    a_on = jax.nn.softmax((e @ p["w_ov"])[..., 0], axis=-1)
    weighted = jnp.einsum("btw,btwn->btn", a_on, windowed)
    onset = jax.nn.sigmoid(weighted @ p["w_o1"] + p["b_o1"])

    xcat = jnp.concatenate([feat, onset], axis=-1)
    h = xcat @ p["w_ca_h"] + p["b_ca"]
    e = jnp.tanh(h[:, :, None, :] + windowed @ p["w_ca_e"])
    a_fr = jax.nn.softmax((e @ p["w_cv"])[..., 0], axis=-1)
    weighted_c = jnp.einsum("btw,btwn->btn", a_fr, windowed)
    frame = jax.nn.sigmoid(xcat @ p["w_cl_x"] + weighted_c @ p["w_cl_w"] + p["b_cl"])

    return frame, a_fr[:, :, None, :], onset, a_on[:, :, None, :], feat


if __name__ == "__main__":
    key = jax.random.PRNGKey(0)
    k_param, k_spec = jax.random.split(key)

    B, T = 4, 16
    spec = jax.random.normal(k_spec, (B, T, N_BINS), jnp.float32)
    params = init_params(k_param)

    outs = simple_model_onset(spec, params)
    outs = jax.block_until_ready(outs)

    refs = reference(spec, params)
    names = ["frame_pred", "a_frame", "onset_pred", "a_onset", "feat_pred"]
    for name, o, r in zip(names, outs, refs):
        assert o.shape == r.shape, (name, o.shape, r.shape)
        if not jnp.allclose(o, r, rtol=2e-3, atol=2e-3):
            raise AssertionError(f"mismatch in {name}")

    print("KERNEL_OK")
</pallas_src>

<mosaic_0001>
module attributes {stable_mosaic.version = 11 : i64} {
  func.func @_model_kernel(%arg0: i32, %arg1: memref<2x16x32xf32, #tpu.memory_space<vmem>>, %arg2: memref<33x192xf32, #tpu.memory_space<vmem>>, %arg3: memref<160x10xf32, #tpu.memory_space<vmem>>, %arg4: memref<2x16x128xf32, #tpu.memory_space<vmem>>) attributes {dimension_semantics = [#tpu.dimension_semantics<parallel>], iteration_bounds = array<i64: 2>, scalar_prefetch = 0 : i64, scratch_operands = 0 : i64, tpu.core_type = #tpu.core_type<tc>, window_params = [{transform_indices = @transform_0, window_bounds = array<i64: 2, 16, 32>}, {pipeline_mode = #tpu.pipeline_mode<synchronous>, transform_indices = @transform_1, window_bounds = array<i64: 33, 192>}, {pipeline_mode = #tpu.pipeline_mode<synchronous>, transform_indices = @transform_2, window_bounds = array<i64: 160, 10>}, {transform_indices = @transform_3, window_bounds = array<i64: 2, 16, 128>}]} {
    %c0 = arith.constant 0 : index
    %c0_0 = arith.constant 0 : index
    %0 = vector.load %arg2[%c0, %c0_0] : memref<33x192xf32, #tpu.memory_space<vmem>>, vector<33x192xf32>
    %1 = vector.extract_strided_slice %0 {offsets = [0, 0], sizes = [32, 48], strides = [1, 1]} : vector<33x192xf32> to vector<32x48xf32>
    %2 = vector.extract_strided_slice %0 {offsets = [0, 48], sizes = [32, 64], strides = [1, 1]} : vector<33x192xf32> to vector<32x64xf32>
    %3 = vector.extract_strided_slice %0 {offsets = [0, 112], sizes = [32, 48], strides = [1, 1]} : vector<33x192xf32> to vector<32x48xf32>
    %4 = vector.extract_strided_slice %0 {offsets = [0, 160], sizes = [32, 32], strides = [1, 1]} : vector<33x192xf32> to vector<32x32xf32>
    %5 = vector.extract_strided_slice %0 {offsets = [32, 0], sizes = [1, 192], strides = [1, 1]} : vector<33x192xf32> to vector<1x192xf32>
    %6 = vector.extract_strided_slice %5 {offsets = [0, 0], sizes = [1, 48], strides = [1, 1]} : vector<1x192xf32> to vector<1x48xf32>
    %7 = vector.extract_strided_slice %5 {offsets = [0, 48], sizes = [1, 48], strides = [1, 1]} : vector<1x192xf32> to vector<1x48xf32>
    %8 = vector.extract_strided_slice %5 {offsets = [0, 96], sizes = [1, 16], strides = [1, 1]} : vector<1x192xf32> to vector<1x16xf32>
    %c0_1 = arith.constant 0 : index
    %c0_2 = arith.constant 0 : index
    %9 = vector.load %arg3[%c0_1, %c0_2] : memref<160x10xf32, #tpu.memory_space<vmem>>, vector<160x10xf32>
    %c0_3 = arith.constant 0 : index
    %c0_4 = arith.constant 0 : index
    %c0_5 = arith.constant 0 : index
    %10 = vector.load %arg1[%c0_3, %c0_4, %c0_5] : memref<2x16x32xf32, #tpu.memory_space<vmem>>, vector<2x16x32xf32>
    %11 = vector.shape_cast %10 : vector<2x16x32xf32> to vector<32x32xf32>
    %cst = arith.constant 0.000000e+00 : f32
    %12 = vector.broadcast %cst : f32 to vector<2x2x32xf32>
    %13 = tpu.concatenate %12, %10, %12 in 1 : vector<2x2x32xf32>, vector<2x16x32xf32>, vector<2x2x32xf32> -> vector<2x20x32xf32>
    %14 = vector.shape_cast %13 : vector<2x20x32xf32> to vector<40x32xf32>
    %cst_6 = arith.constant dense<0.000000e+00> : vector<32x48xf32>
    %15 = tpu.matmul %11, %1, %cst_6 {dimension_numbers = #tpu.dot_dimension_numbers<[1], [0], [0], [1], [0, 0, 1, 1], [], []>} : vector<32x32xf32>, vector<32x48xf32>, vector<32x48xf32> -> vector<32x48xf32>
    %16 = vector.broadcast %6 : vector<1x48xf32> to vector<32x48xf32>
    %17 = arith.addf %15, %16 : vector<32x48xf32>
    %18 = vector.extract_strided_slice %17 {offsets = [0, 0], sizes = [32, 16], strides = [1, 1]} : vector<32x48xf32> to vector<32x16xf32>
    %19 = vector.extract_strided_slice %17 {offsets = [0, 16], sizes = [32, 32], strides = [1, 1]} : vector<32x48xf32> to vector<32x32xf32>
    %20 = vector.shape_cast %19 : vector<32x32xf32> to vector<2x16x32xf32>
    %cst_7 = arith.constant dense<0.000000e+00> : vector<40x64xf32>
    %21 = tpu.matmul %14, %2, %cst_7 {dimension_numbers = #tpu.dot_dimension_numbers<[1], [0], [0], [1], [0, 0, 1, 1], [], []>} : vector<40x32xf32>, vector<32x64xf32>, vector<40x64xf32> -> vector<40x64xf32>
    %22 = vector.shape_cast %21 : vector<40x64xf32> to vector<2x20x64xf32>
    %23 = vector.extract_strided_slice %22 {offsets = [0, 0, 0], sizes = [2, 20, 32], strides = [1, 1, 1]} : vector<2x20x64xf32> to vector<2x20x32xf32>
    %24 = vector.extract_strided_slice %22 {offsets = [0, 0, 32], sizes = [2, 20, 32], strides = [1, 1, 1]} : vector<2x20x64xf32> to vector<2x20x32xf32>
    %25 = vector.extract_strided_slice %13 {offsets = [0, 0, 0], sizes = [2, 16, 32], strides = [1, 1, 1]} : vector<2x20x32xf32> to vector<2x16x32xf32>
    %26 = vector.shape_cast %25 : vector<2x16x32xf32> to vector<32x32xf32>
    %27 = vector.extract_strided_slice %13 {offsets = [0, 1, 0], sizes = [2, 16, 32], strides = [1, 1, 1]} : vector<2x20x32xf32> to vector<2x16x32xf32>
    %28 = vector.shape_cast %27 : vector<2x16x32xf32> to vector<32x32xf32>
    %29 = vector.extract_strided_slice %13 {offsets = [0, 2, 0], sizes = [2, 16, 32], strides = [1, 1, 1]} : vector<2x20x32xf32> to vector<2x16x32xf32>
    %30 = vector.shape_cast %29 : vector<2x16x32xf32> to vector<32x32xf32>
    %31 = vector.extract_strided_slice %13 {offsets = [0, 3, 0], sizes = [2, 16, 32], strides = [1, 1, 1]} : vector<2x20x32xf32> to vector<2x16x32xf32>
    %32 = vector.shape_cast %31 : vector<2x16x32xf32> to vector<32x32xf32>
    %33 = vector.extract_strided_slice %13 {offsets = [0, 4, 0], sizes = [2, 16, 32], strides = [1, 1, 1]} : vector<2x20x32xf32> to vector<2x16x32xf32>
    %34 = vector.shape_cast %33 : vector<2x16x32xf32> to vector<32x32xf32>
    %35 = vector.extract_strided_slice %23 {offsets = [0, 0, 0], sizes = [2, 16, 32], strides = [1, 1, 1]} : vector<2x20x32xf32> to vector<2x16x32xf32>
    %36 = arith.addf %20, %35 : vector<2x16x32xf32>
    %37 = vector.extract_strided_slice %23 {offsets = [0, 1, 0], sizes = [2, 16, 32], strides = [1, 1, 1]} : vector<2x20x32xf32> to vector<2x16x32xf32>
    %38 = arith.addf %20, %37 : vector<2x16x32xf32>
    %39 = vector.extract_strided_slice %23 {offsets = [0, 2, 0], sizes = [2, 16, 32], strides = [1, 1, 1]} : vector<2x20x32xf32> to vector<2x16x32xf32>
    %40 = arith.addf %20, %39 : vector<2x16x32xf32>
    %41 = vector.extract_strided_slice %23 {offsets = [0, 3, 0], sizes = [2, 16, 32], strides = [1, 1, 1]} : vector<2x20x32xf32> to vector<2x16x32xf32>
    %42 = arith.addf %20, %41 : vector<2x16x32xf32>
    %43 = vector.extract_strided_slice %23 {offsets = [0, 4, 0], sizes = [2, 16, 32], strides = [1, 1, 1]} : vector<2x20x32xf32> to vector<2x16x32xf32>
    %44 = arith.addf %20, %43 : vector<2x16x32xf32>
    %45 = tpu.concatenate %36, %38, %40, %42, %44 in 2 : vector<2x16x32xf32>, vector<2x16x32xf32>, vector<2x16x32xf32>, vector<2x16x32xf32>, vector<2x16x32xf32> -> vector<2x16x160xf32>
    %46 = math.tanh %45 : vector<2x16x160xf32>
    %47 = vector.shape_cast %46 : vector<2x16x160xf32> to vector<32x160xf32>
    %48 = vector.extract_strided_slice %9 {offsets = [0, 0], sizes = [160, 5], strides = [1, 1]} : vector<160x10xf32> to vector<160x5xf32>
    %cst_8 = arith.constant dense<0.000000e+00> : vector<32x5xf32>
    %49 = tpu.matmul %47, %48, %cst_8 {dimension_numbers = #tpu.dot_dimension_numbers<[1], [0], [0], [1], [0, 0, 1, 1], [], []>} : vector<32x160xf32>, vector<160x5xf32>, vector<32x5xf32> -> vector<32x5xf32>
    %cst_9 = arith.constant dense<0xFF800000> : vector<32xf32>
    %50 = vector.multi_reduction <maximumf>, %49, %cst_9 [1] : vector<32x5xf32> to vector<32xf32>
    %51 = vector.shape_cast %50 : vector<32xf32> to vector<32x1xf32>
    %52 = vector.broadcast %51 : vector<32x1xf32> to vector<32x5xf32>
    %53 = arith.subf %49, %52 : vector<32x5xf32>
    %54 = math.exp %53 : vector<32x5xf32>
    %cst_10 = arith.constant dense<0.000000e+00> : vector<32xf32>
    %55 = vector.multi_reduction <add>, %54, %cst_10 [1] : vector<32x5xf32> to vector<32xf32>
    %56 = vector.shape_cast %55 : vector<32xf32> to vector<32x1xf32>
    %57 = tpu.reciprocal %56 : vector<32x1xf32> -> vector<32x1xf32>
    %58 = vector.broadcast %57 : vector<32x1xf32> to vector<32x5xf32>
    %59 = arith.mulf %54, %58 : vector<32x5xf32>
    %60 = vector.extract_strided_slice %59 {offsets = [0, 0], sizes = [32, 1], strides = [1, 1]} : vector<32x5xf32> to vector<32x1xf32>
    %61 = vector.broadcast %60 : vector<32x1xf32> to vector<32x32xf32>
    %62 = arith.mulf %61, %26 : vector<32x32xf32>
    %63 = vector.extract_strided_slice %59 {offsets = [0, 1], sizes = [32, 1], strides = [1, 1]} : vector<32x5xf32> to vector<32x1xf32>
    %64 = vector.broadcast %63 : vector<32x1xf32> to vector<32x32xf32>
    %65 = arith.mulf %64, %28 : vector<32x32xf32>
    %66 = arith.addf %62, %65 : vector<32x32xf32>
    %67 = vector.extract_strided_slice %59 {offsets = [0, 2], sizes = [32, 1], strides = [1, 1]} : vector<32x5xf32> to vector<32x1xf32>
    %68 = vector.broadcast %67 : vector<32x1xf32> to vector<32x32xf32>
    %69 = arith.mulf %68, %30 : vector<32x32xf32>
    %70 = arith.addf %66, %69 : vector<32x32xf32>
    %71 = vector.extract_strided_slice %59 {offsets = [0, 3], sizes = [32, 1], strides = [1, 1]} : vector<32x5xf32> to vector<32x1xf32>
    %72 = vector.broadcast %71 : vector<32x1xf32> to vector<32x32xf32>
    %73 = arith.mulf %72, %32 : vector<32x32xf32>
    %74 = arith.addf %70, %73 : vector<32x32xf32>
    %75 = vector.extract_strided_slice %59 {offsets = [0, 4], sizes = [32, 1], strides = [1, 1]} : vector<32x5xf32> to vector<32x1xf32>
    %76 = vector.broadcast %75 : vector<32x1xf32> to vector<32x32xf32>
    %77 = arith.mulf %76, %34 : vector<32x32xf32>
    %78 = arith.addf %74, %77 : vector<32x32xf32>
    %79 = vector.extract_strided_slice %4 {offsets = [0, 0], sizes = [32, 16], strides = [1, 1]} : vector<32x32xf32> to vector<32x16xf32>
    %cst_11 = arith.constant dense<0.000000e+00> : vector<32x16xf32>
    %80 = tpu.matmul %78, %79, %cst_11 {dimension_numbers = #tpu.dot_dimension_numbers<[1], [0], [0], [1], [0, 0, 1, 1], [], []>} : vector<32x32xf32>, vector<32x16xf32>, vector<32x16xf32> -> vector<32x16xf32>
    %81 = vector.broadcast %8 : vector<1x16xf32> to vector<32x16xf32>
    %82 = arith.addf %80, %81 : vector<32x16xf32>
    %83 = arith.negf %82 : vector<32x16xf32>
    %84 = math.exp %83 : vector<32x16xf32>
    %cst_12 = arith.constant 1.000000e+00 : f32
    %85 = vector.broadcast %cst_12 : f32 to vector<32x16xf32>
    %86 = arith.addf %85, %84 : vector<32x16xf32>
    %87 = arith.divf %85, %86 : vector<32x16xf32>
    %88 = tpu.concatenate %18, %87 in 1 : vector<32x16xf32>, vector<32x16xf32> -> vector<32x32xf32>
    %cst_13 = arith.constant dense<0.000000e+00> : vector<32x48xf32>
    %89 = tpu.matmul %88, %3, %cst_13 {dimension_numbers = #tpu.dot_dimension_numbers<[1], [0], [0], [1], [0, 0, 1, 1], [], []>} : vector<32x32xf32>, vector<32x48xf32>, vector<32x48xf32> -> vector<32x48xf32>
    %90 = vector.broadcast %7 : vector<1x48xf32> to vector<32x48xf32>
    %91 = arith.addf %89, %90 : vector<32x48xf32>
    %92 = vector.extract_strided_slice %91 {offsets = [0, 0], sizes = [32, 32], strides = [1, 1]} : vector<32x48xf32> to vector<32x32xf32>
    %93 = vector.shape_cast %92 : vector<32x32xf32> to vector<2x16x32xf32>
    %94 = vector.extract_strided_slice %91 {offsets = [0, 32], sizes = [32, 16], strides = [1, 1]} : vector<32x48xf32> to vector<32x16xf32>
    %95 = vector.extract_strided_slice %24 {offsets = [0, 0, 0], sizes = [2, 16, 32], strides = [1, 1, 1]} : vector<2x20x32xf32> to vector<2x16x32xf32>
    %96 = arith.addf %93, %95 : vector<2x16x32xf32>
    %97 = vector.extract_strided_slice %24 {offsets = [0, 1, 0], sizes = [2, 16, 32], strides = [1, 1, 1]} : vector<2x20x32xf32> to vector<2x16x32xf32>
    %98 = arith.addf %93, %97 : vector<2x16x32xf32>
    %99 = vector.extract_strided_slice %24 {offsets = [0, 2, 0], sizes = [2, 16, 32], strides = [1, 1, 1]} : vector<2x20x32xf32> to vector<2x16x32xf32>
    %100 = arith.addf %93, %99 : vector<2x16x32xf32>
    %101 = vector.extract_strided_slice %24 {offsets = [0, 3, 0], sizes = [2, 16, 32], strides = [1, 1, 1]} : vector<2x20x32xf32> to vector<2x16x32xf32>
    %102 = arith.addf %93, %101 : vector<2x16x32xf32>
    %103 = vector.extract_strided_slice %24 {offsets = [0, 4, 0], sizes = [2, 16, 32], strides = [1, 1, 1]} : vector<2x20x32xf32> to vector<2x16x32xf32>
    %104 = arith.addf %93, %103 : vector<2x16x32xf32>
    %105 = tpu.concatenate %96, %98, %100, %102, %104 in 2 : vector<2x16x32xf32>, vector<2x16x32xf32>, vector<2x16x32xf32>, vector<2x16x32xf32>, vector<2x16x32xf32> -> vector<2x16x160xf32>
    %106 = math.tanh %105 : vector<2x16x160xf32>
    %107 = vector.shape_cast %106 : vector<2x16x160xf32> to vector<32x160xf32>
    %108 = vector.extract_strided_slice %9 {offsets = [0, 5], sizes = [160, 5], strides = [1, 1]} : vector<160x10xf32> to vector<160x5xf32>
    %cst_14 = arith.constant dense<0.000000e+00> : vector<32x5xf32>
    %109 = tpu.matmul %107, %108, %cst_14 {dimension_numbers = #tpu.dot_dimension_numbers<[1], [0], [0], [1], [0, 0, 1, 1], [], []>} : vector<32x160xf32>, vector<160x5xf32>, vector<32x5xf32> -> vector<32x5xf32>
    %cst_15 = arith.constant dense<0xFF800000> : vector<32xf32>
    %110 = vector.multi_reduction <maximumf>, %109, %cst_15 [1] : vector<32x5xf32> to vector<32xf32>
    %111 = vector.shape_cast %110 : vector<32xf32> to vector<32x1xf32>
    %112 = vector.broadcast %111 : vector<32x1xf32> to vector<32x5xf32>
    %113 = arith.subf %109, %112 : vector<32x5xf32>
    %114 = math.exp %113 : vector<32x5xf32>
    %cst_16 = arith.constant dense<0.000000e+00> : vector<32xf32>
    %115 = vector.multi_reduction <add>, %114, %cst_16 [1] : vector<32x5xf32> to vector<32xf32>
    %116 = vector.shape_cast %115 : vector<32xf32> to vector<32x1xf32>
    %117 = tpu.reciprocal %116 : vector<32x1xf32> -> vector<32x1xf32>
    %118 = vector.broadcast %117 : vector<32x1xf32> to vector<32x5xf32>
    %119 = arith.mulf %114, %118 : vector<32x5xf32>
    %120 = vector.extract_strided_slice %119 {offsets = [0, 0], sizes = [32, 1], strides = [1, 1]} : vector<32x5xf32> to vector<32x1xf32>
    %121 = vector.broadcast %120 : vector<32x1xf32> to vector<32x32xf32>
    %122 = arith.mulf %121, %26 : vector<32x32xf32>
    %123 = vector.extract_strided_slice %119 {offsets = [0, 1], sizes = [32, 1], strides = [1, 1]} : vector<32x5xf32> to vector<32x1xf32>
    %124 = vector.broadcast %123 : vector<32x1xf32> to vector<32x32xf32>
    %125 = arith.mulf %124, %28 : vector<32x32xf32>
    %126 = arith.addf %122, %125 : vector<32x32xf32>
    %127 = vector.extract_strided_slice %119 {offsets = [0, 2], sizes = [32, 1], strides = [1, 1]} : vector<32x5xf32> to vector<32x1xf32>
    %128 = vector.broadcast %127 : vector<32x1xf32> to vector<32x32xf32>
    %129 = arith.mulf %128, %30 : vector<32x32xf32>
    %130 = arith.addf %126, %129 : vector<32x32xf32>
    %131 = vector.extract_strided_slice %119 {offsets = [0, 3], sizes = [32, 1], strides = [1, 1]} : vector<32x5xf32> to vector<32x1xf32>
    %132 = vector.broadcast %131 : vector<32x1xf32> to vector<32x32xf32>
    %133 = arith.mulf %132, %32 : vector<32x32xf32>
    %134 = arith.addf %130, %133 : vector<32x32xf32>
    %135 = vector.extract_strided_slice %119 {offsets = [0, 4], sizes = [32, 1], strides = [1, 1]} : vector<32x5xf32> to vector<32x1xf32>
    %136 = vector.broadcast %135 : vector<32x1xf32> to vector<32x32xf32>
    %137 = arith.mulf %136, %34 : vector<32x32xf32>
    %138 = arith.addf %134, %137 : vector<32x32xf32>
    %139 = vector.extract_strided_slice %4 {offsets = [0, 16], sizes = [32, 16], strides = [1, 1]} : vector<32x32xf32> to vector<32x16xf32>
    %cst_17 = arith.constant dense<0.000000e+00> : vector<32x16xf32>
    %140 = tpu.matmul %138, %139, %cst_17 {dimension_numbers = #tpu.dot_dimension_numbers<[1], [0], [0], [1], [0, 0, 1, 1], [], []>} : vector<32x32xf32>, vector<32x16xf32>, vector<32x16xf32> -> vector<32x16xf32>
    %141 = arith.addf %94, %140 : vector<32x16xf32>
    %142 = arith.negf %141 : vector<32x16xf32>
    %143 = math.exp %142 : vector<32x16xf32>
    %cst_18 = arith.constant 1.000000e+00 : f32
    %144 = vector.broadcast %cst_18 : f32 to vector<32x16xf32>
    %145 = arith.addf %144, %143 : vector<32x16xf32>
    %146 = arith.divf %144, %145 : vector<32x16xf32>
    %cst_19 = arith.constant 0.000000e+00 : f32
    %147 = vector.broadcast %cst_19 : f32 to vector<32x70xf32>
    %148 = tpu.concatenate %146, %87, %18, %119, %59, %147 in 1 : vector<32x16xf32>, vector<32x16xf32>, vector<32x16xf32>, vector<32x5xf32>, vector<32x5xf32>, vector<32x70xf32> -> vector<32x128xf32>
    %149 = vector.shape_cast %148 : vector<32x128xf32> to vector<2x16x128xf32>
    %c0_20 = arith.constant 0 : index
    %c0_21 = arith.constant 0 : index
    %c0_22 = arith.constant 0 : index
    %150 = vector.load %arg4[%c0_20, %c0_21, %c0_22] : memref<2x16x128xf32, #tpu.memory_space<vmem>>, vector<2x16x128xf32>
    tpu.vector_store %arg4[%c0_20, %c0_21, %c0_22], %149 {strides = array<i32>} : memref<2x16x128xf32, #tpu.memory_space<vmem>>, vector<2x16x128xf32>,
    return
  }
  func.func @transform_0(%arg0: i32) -> (i32, i32, i32) {
    %c0_i32 = arith.constant 0 : i32
    %c0_i32_0 = arith.constant 0 : i32
    %c0_i32_1 = arith.constant 0 : i32
    return %arg0, %c0_i32, %c0_i32_0 : i32, i32, i32
  }
  func.func @transform_1(%arg0: i32) -> (i32, i32) {
    %c0_i32 = arith.constant 0 : i32
    %c0_i32_0 = arith.constant 0 : i32
    %c0_i32_1 = arith.constant 0 : i32
    return %c0_i32, %c0_i32_0 : i32, i32
  }
  func.func @transform_2(%arg0: i32) -> (i32, i32) {
    %c0_i32 = arith.constant 0 : i32
    %c0_i32_0 = arith.constant 0 : i32
    %c0_i32_1 = arith.constant 0 : i32
    return %c0_i32, %c0_i32_0 : i32, i32
  }
  func.func @transform_3(%arg0: i32) -> (i32, i32, i32) {
    %c0_i32 = arith.constant 0 : i32
    %c0_i32_0 = arith.constant 0 : i32
    %c0_i32_1 = arith.constant 0 : i32
    return %arg0, %c0_i32, %c0_i32_0 : i32, i32, i32
  }
}

</mosaic_0001>

<llo_original>
// kernel: tpu_custom_call.1
$region0: #{tpu_custom_call.1}
  #allocation0 [shape = 'u32[]', space=smem, size = 0x4, offset = 0x4, fixed_abs, tag = 'smem constant byte address 0x4 - core index']
  #allocation1 [shape = 'u32[72,128]{1,0:T(1,128)}', space=vmem, size = 0x9000, scoped, tag = 'internal scratch']
  %s0 = inlined_call_operand.vmem [shape: f32[4,16,32], index: 0, kind: input, shape index: {}]
  %s1 = inlined_call_operand.vmem [shape: f32[33,192], index: 1, kind: input, shape index: {}]
  %s2 = inlined_call_operand.vmem [shape: f32[160,10], index: 2, kind: input, shape index: {}]
  %s3 = inlined_call_operand.hbm [shape: f32[4,16,128], index: 3, kind: output, shape index: {}]
  %s4 = sld [smem:[#allocation0]]
  $region45: #{tpu_custom_call.1} parent=0
    _
  %s6 = ssub.s32 1, %s4
  %s7 = scalar_select 0, %s6, %s4
  $region1: #{tpu_custom_call.1} parent=0
    #allocation2 [shape = 'u8[32768]{0}', space=vmem, size = 0x8000, scoped, tag = 'output window, operand 0']
    #allocation3 [shape = 's32[2]{0}', space=sflag, size = 0x8, scoped, tag = 'scoped memory for tpu_custom_call.1']
    %8 = vsyncpa [#allocation3], 0
    %s9 = scalar_lea.sflag [#allocation3], 1
    %10 = vsyncpa %s9, 0
    loop: start=0, step=1, limit=4
    $region2: #{tpu_custom_call.1} parent=1 // loop_pre_header
      _
    $region3: #{tpu_custom_call.1} parent=1 // loop_header
      %s12 = sphi 0, %s16
      %p13 = scmp.ge.s32.totalorder %s12, 4
      %s22 = sphi 0, %s24
      %s25 = sphi 0, %s22
      %s26 = sphi 0, %s25
      %s42 = sphi 0, %s26
      %s46 = sphi 0, %s46
      %s48 = sphi 0, %s46
      %s49 = sphi 0, %s48
      %s63 = sphi 0, %s49
      %s67 = sphi 0, %s67
      %s69 = sphi 0, %s67
      %s70 = sphi 0, %s69
      %s84 = sphi 0, %s70
      %s90 = sphi 0, %s92
      %s93 = sphi 0, %s90
      %s94 = sphi 0, %s93
      %s110 = sphi 0, %s94
    $region4: #{tpu_custom_call.1} parent=1 // loop_header_branch
      %15 = sbr.rel (%p13) target = $region8
    $region5: #{tpu_custom_call.1} parent=1 // loop_body
      %s17 = ssub.s32 %s12, 1
      %s18 = ssub.s32 %s12, 2
      %s19 = sadd.s32 %s12, 1
      %s20 = ssub.s32 %s12, %s19
      %p21 = scmp.eq.s32.totalorder %s20, 0
      %s23 = sadd.s32 %s22, 1
      %s24 = scalar_select %p21, %s22, %s23
      %p27 = pneg %p21
      %p28 = scmp.eq.s32.totalorder %s12, 1
      %p29 = por %p27, %p28
      %p30 = scmp.ne.s32.totalorder %s22, %s25
      %p31 = scmp.eq.s32.totalorder %s12, 0
      %p32 = por %p30, %p31
      %p33 = scmp.ne.s32.totalorder %s22, %s25
      %p34 = scmp.eq.s32.totalorder %s17, 1
      %p35 = por %p33, %p34
      %p36 = scmp.ne.s32.totalorder %s25, %s26
      %p37 = scmp.eq.s32.totalorder %s17, 0
      %p38 = por %p36, %p37
      %p39 = scmp.ne.s32.totalorder %s25, %s26
      %p40 = scmp.eq.s32.totalorder %s18, 1
      %p41 = por %p39, %p40
      %p43 = scmp.ne.s32.totalorder %s26, %s42
      %p44 = scmp.eq.s32.totalorder %s18, 0
      %p45 = por %p43, %p44
      %s47 = sadd.s32 %s46, 1
      %p50 = scmp.eq.s32.totalorder %s12, 1
      %p51 = scmp.ne.s32.totalorder %s46, %s48
      %p52 = scmp.eq.s32.totalorder %s12, 0
      %p53 = por %p51, %p52
      %p54 = scmp.ne.s32.totalorder %s46, %s48
      %p55 = scmp.eq.s32.totalorder %s17, 1
      %p56 = por %p54, %p55
      %p57 = scmp.ne.s32.totalorder %s48, %s49
      %p58 = scmp.eq.s32.totalorder %s17, 0
      %p59 = por %p57, %p58
      %p60 = scmp.ne.s32.totalorder %s48, %s49
      %p61 = scmp.eq.s32.totalorder %s18, 1
      %p62 = por %p60, %p61
      %p64 = scmp.ne.s32.totalorder %s49, %s63
      %p65 = scmp.eq.s32.totalorder %s18, 0
      %p66 = por %p64, %p65
      %s68 = sadd.s32 %s67, 1
      %p71 = scmp.eq.s32.totalorder %s12, 1
      %p72 = scmp.ne.s32.totalorder %s67, %s69
      %p73 = scmp.eq.s32.totalorder %s12, 0
      %p74 = por %p72, %p73
      %p75 = scmp.ne.s32.totalorder %s67, %s69
      %p76 = scmp.eq.s32.totalorder %s17, 1
      %p77 = por %p75, %p76
      %p78 = scmp.ne.s32.totalorder %s69, %s70
      %p79 = scmp.eq.s32.totalorder %s17, 0
      %p80 = por %p78, %p79
      %p81 = scmp.ne.s32.totalorder %s69, %s70
      %p82 = scmp.eq.s32.totalorder %s18, 1
      %p83 = por %p81, %p82
      %p85 = scmp.ne.s32.totalorder %s70, %s84
      %p86 = scmp.eq.s32.totalorder %s18, 0
      %p87 = por %p85, %p86
      %s88 = ssub.s32 %s12, %s19
      %p89 = scmp.eq.s32.totalorder %s88, 0
      %s91 = sadd.s32 %s90, 1
      %s92 = scalar_select %p89, %s90, %s91
      %p95 = pneg %p89
      %p96 = scmp.eq.s32.totalorder %s12, 1
      %p97 = por %p95, %p96
      %p98 = scmp.ne.s32.totalorder %s90, %s93
      %p99 = scmp.eq.s32.totalorder %s12, 0
      %p100 = por %p98, %p99
      %p101 = scmp.ne.s32.totalorder %s90, %s93
      %p102 = scmp.eq.s32.totalorder %s17, 1
      %p103 = por %p101, %p102
      %p104 = scmp.ne.s32.totalorder %s93, %s94
      %p105 = scmp.eq.s32.totalorder %s17, 0
      %p106 = por %p104, %p105
      %p107 = scmp.ne.s32.totalorder %s93, %s94
      %p108 = scmp.eq.s32.totalorder %s18, 1
      %p109 = por %p107, %p108
      %p111 = scmp.ne.s32.totalorder %s94, %s110
      %p112 = scmp.eq.s32.totalorder %s18, 0
      %p113 = por %p111, %p112
      %p114 = scmp.le.s32.totalorder 1, %s12
      %p115 = scmp.lt.s32.totalorder %s12, 3
      %p116 = pnand %p114, %p115
      %p117 = pneg %p116
      // Predicated region
      $region9: #{tpu_custom_call.1} parent=5 // pred_check
        _
      $region10: #{tpu_custom_call.1} parent=5 // pred_check_branch
        %119 = sbr.rel (%p116) target = $region12
      $region11: #{tpu_custom_call.1} parent=5 // pred_region
        %s120 = ssub.s32 %s12, 1
        // Predicated region
        $region13: #{tpu_custom_call.1} parent=11 // pred_check
          %p121 = pneg %p59
        $region14: #{tpu_custom_call.1} parent=11 // pred_check_branch
          %123 = sbr.rel (%p121) target = $region16
        $region15: #{tpu_custom_call.1} parent=11 // pred_region
          _
        $region16: #{tpu_custom_call.1} parent=11 // pred_fallthru
          _
        // Predicated region
        $region17: #{tpu_custom_call.1} parent=11 // pred_check
          %p124 = pneg %p80
        $region18: #{tpu_custom_call.1} parent=11 // pred_check_branch
          %126 = sbr.rel (%p124) target = $region20
        $region19: #{tpu_custom_call.1} parent=11 // pred_region
          _
        $region20: #{tpu_custom_call.1} parent=11 // pred_fallthru
          _
      $region12: #{tpu_custom_call.1} parent=5 // pred_fallthru
        _
      %p127 = scmp.lt.s32.totalorder %s12, 2
      // Predicated region
      $region21: #{tpu_custom_call.1} parent=5 // pred_check
        %p128 = pneg %p127
      $region22: #{tpu_custom_call.1} parent=5 // pred_check_branch
        %130 = sbr.rel (%p128) target = $region24
      $region23: #{tpu_custom_call.1} parent=5 // pred_region
        // Predicated region
        $region25: #{tpu_custom_call.1} parent=23 // pred_check
          %p131 = pneg %p32
        $region26: #{tpu_custom_call.1} parent=23 // pred_check_branch
          %133 = sbr.rel (%p131) target = $region28
        $region27: #{tpu_custom_call.1} parent=23 // pred_region
          %s134 = smul.u32 2, %s12
          %p135 = scmp.lt.s32.totalorder %s134, 3
          %s136 = scalar_select %p135, %s134, 3
          %s137 = smul.addr %s136, 2
          %s138 = smul.addr %s137, 8
          %s139 = scalar_lea.vmem %s0, %s138
          %s140 = smul.u32 2, %s12
        $region28: #{tpu_custom_call.1} parent=23 // pred_fallthru
          _
      $region24: #{tpu_custom_call.1} parent=5 // pred_fallthru
        _
      %p141 = scmp.le.s32.totalorder 1, %s12
      %p142 = scmp.lt.s32.totalorder %s12, 3
      %p143 = pnand %p141, %p142
      %p144 = pneg %p143
      // Predicated region
      $region29: #{tpu_custom_call.1} parent=5 // pred_check
        _
      $region30: #{tpu_custom_call.1} parent=5 // pred_check_branch
        %146 = sbr.rel (%p143) target = $region32
      $region31: #{tpu_custom_call.1} parent=5 // pred_region
        %s147 = ssub.s32 %s12, 1
        %s148 = smul.u32 2, %s17
        %p149 = scmp.lt.s32.totalorder %s148, 3
        %s150 = scalar_select %p149, %s148, 3
        %s151 = smul.addr %s150, 2
        %s152 = smul.addr %s151, 8
        %s153 = scalar_lea.vmem %s0, %s152
        %p154 = pneg %p38
        %p155 = pneg %p35
        %p156 = pneg %p59
        %p157 = pneg %p56
        %p158 = pneg %p80
        %p159 = pneg %p77
        %p160 = pneg %p106
        %p161 = pneg %p103
        %s162 = sand.u32 %s93, 1
        %s163 = scalar_lea.sflag [#allocation3], %s162
        %s164 = sand.u32 %s93, 1
        %s165 = smul.addr %s164, 32
        %s166 = scalar_lea.vmem [#allocation2], %s165
        %s167 = smul.u32 2, %s17
        %p168 = scmp.lt.s32.totalorder %s167, 3
        %s169 = scalar_select %p168, %s167, 3
        %s170 = smul.addr %s169, 2
        %s171 = smul.addr %s170, 8
        %s172 = scalar_lea.vmem %s0, %s171
        %s173 = smul.u32 2, %s17
        %s174 = smul.u32 2, %s17
        %v175 = vld [vmem:[%s1] sm:$0xff]
        %v176 = vld [vmem:[%s1 + $0x8] sm:$0xff]
        %v177 = vld [vmem:[%s1 + $0x10] sm:$0xff]
        %v178 = vld [vmem:[%s1 + $0x18] sm:$0xff]
        %v179 = vld [vmem:[%s1 + $0x20] sm:$0xff]
        %v180 = vld [vmem:[%s1 + $0x28] sm:$0xff]
        %v181 = vld [vmem:[%s1 + $0x30] sm:$0xff]
        %v182 = vld [vmem:[%s1 + $0x38] sm:$0xff]
        %v183 = vld [vmem:[%s1 + $0x40] sm:$0x1]
        %v184 = vld [vmem:[%s2] sm:$0xff]
        %v185 = vld [vmem:[%s2 + $0x8] sm:$0xff]
        %v186 = vld [vmem:[%s2 + $0x10] sm:$0xff]
        %v187 = vld [vmem:[%s2 + $0x18] sm:$0xff]
        %v188 = vld [vmem:[%s2 + $0x20] sm:$0xff]
        %v189 = vld [vmem:[%s2 + $0x28] sm:$0xff]
        %v190 = vld [vmem:[%s2 + $0x30] sm:$0xff]
        %v191 = vld [vmem:[%s2 + $0x38] sm:$0xff]
        %v192 = vld [vmem:[%s2 + $0x40] sm:$0xff]
        %v193 = vld [vmem:[%s2 + $0x48] sm:$0xff]
        %v194 = vld [vmem:[%s2 + $0x50] sm:$0xff]
        %v195 = vld [vmem:[%s2 + $0x58] sm:$0xff]
        %v196 = vld [vmem:[%s2 + $0x60] sm:$0xff]
        %v197 = vld [vmem:[%s2 + $0x68] sm:$0xff]
        %v198 = vld [vmem:[%s2 + $0x70] sm:$0xff]
        %v199 = vld [vmem:[%s2 + $0x78] sm:$0xff]
        %v200 = vld [vmem:[%s2 + $0x80] sm:$0xff]
        %v201 = vld [vmem:[%s2 + $0x88] sm:$0xff]
        %v202 = vld [vmem:[%s2 + $0x90] sm:$0xff]
        %v203 = vld [vmem:[%s2 + $0x98] sm:$0xff]
        %v204 = vld [vmem:[%s172] sm:$0xff]
        %v205 = vld [vmem:[%s172 + $0x8] sm:$0xff]
        %v206 = vld [vmem:[%s172 + $0x10] sm:$0xff]
        %v207 = vld [vmem:[%s172 + $0x18] sm:$0xff]
        %vm212 = vcmask 1041408
        %v213 = vrot.slane %v204, 6
        %v214 = vrot.slane %v205, 6
        %v215 = vsel %vm212, %v213, %v214
        %v216 = vrot.slane %v206, 6
        %v217 = vrot.slane %v207, 6
        %v218 = vsel %vm212, %v216, %v217
        %v225 = vsel %vm212, 0.0, %v213
        %v226 = vsel %vm212, 0.0, %v216
        %v227 = vsel %vm212, %v214, 0.0
        %v228 = vsel %vm212, %v217, 0.0
        %v233 = vrot.slane %v225, 4
        %v234 = vrot.slane %v215, 4
        %v235 = vrot.slane %v226, 4
        %v236 = vrot.slane %v218, 4
        %v237 = vperm.slane %v183, 0
        %vm238 = vcmask 261120
        %v239 = vsel %vm238, %v204, 0
        %v241 = vsel %vm238, %v205, 0
        %v243 = vsel %vm238, %v206, 0
        %v245 = vsel %vm238, %v207, 0
        %247 = vmatpush.msra.mxu0 0.0
        %248 = vmatpush.msra.mxu0 0.0
        %249 = vmatpush.msra.mxu0 0.0
        %250 = vmatpush.msra.mxu0 0.0
        %251 = vmatpush.msra.mxu0 0.0
        %252 = vmatpush.msra.mxu0 0.0
        %253 = vmatpush.msra.mxu0 0.0
        %254 = vmatpush.msra.mxu0 0.0
        %255 = vmatpush.msra.mxu0 0.0
        %256 = vmatpush.msra.mxu0 0.0
        %257 = vmatpush.msra.mxu0 0.0
        %258 = vmatpush.msra.mxu0 0.0
        %259 = vmatpush.msra.mxu0 %v181
        %260 = vmatpush.msra.mxu0 %v179
        %261 = vmatpush.msra.mxu0 %v177
        %262 = vmatpush.msra.mxu0 %v175
        %263 = vmatmul.f32.gmra.mxu0 %v239
        %v264 = vpop.f32.mrf.mxu0
        %v265 = vadd.f32 %v237, %v264
        %266 = vmatmul.f32.gmra.mxu0 %v241
        %v267 = vpop.f32.mrf.mxu0
        %v268 = vadd.f32 %v237, %v267
        %269 = vmatmul.f32.gmra.mxu0 %v243
        %v270 = vpop.f32.mrf.mxu0
        %v271 = vadd.f32 %v237, %v270
        %272 = vmatmul.f32.gmra.mxu0 %v245
        %v273 = vpop.f32.mrf.mxu0
        %v274 = vadd.f32 %v237, %v273
        %275 = vdwg.mxu0
        %276 = vst [vmem:[#allocation1] ss:$2 sm:$0xff] %v225
        %s277 = scalar_lea.vmem [#allocation1], 1
        %278 = vst [vmem:[%s277] ss:$2 sm:$0xff] %v233
        %s279 = scalar_lea.vmem [#allocation1], 16
        %280 = vst [vmem:[%s279] ss:$2 sm:$0xff] %v215
        %s281 = scalar_lea.vmem [#allocation1], 17
        %282 = vst [vmem:[%s281] ss:$2 sm:$0xff] %v234
        %s283 = scalar_lea.vmem [#allocation1], 32
        %284 = vst [vmem:[%s283] ss:$2 sm:$0xff] %v227
        %s285 = scalar_lea.vmem [#allocation1], 33
        %286 = vst [vmem:[%s285] ss:$2 sm:$0xff] %v226
        %s287 = scalar_lea.vmem [#allocation1], 48
        %288 = vst [vmem:[%s287] ss:$2 sm:$0xff] %v235
        %s289 = scalar_lea.vmem [#allocation1], 49
        %290 = vst [vmem:[%s289] ss:$2 sm:$0xff] %v218
        %v291 = vld.sshfl [vmem:[#allocation1] sm:$0xff pattern:$0x75316420]
        %v292 = vld.sshfl [vmem:[#allocation1 + $0x10] sm:$0xff pattern:$0x75316420]
        %v293 = vld.sshfl [vmem:[#allocation1 + $0x20] sm:$0xff pattern:$0x75316420]
        %v294 = vld.sshfl [vmem:[#allocation1 + $0x30] sm:$0xff pattern:$0x75316420]
        %295 = vst [vmem:[#allocation1] ss:$2 sm:$0xff] %v236
        %296 = vst [vmem:[%s277] ss:$2 sm:$0xff] %v228
        %v297 = vld.sshfl [vmem:[#allocation1] sm:$0xff pattern:$0x75316420]
        %302 = vrot.lane.b32.xlu0 %v175, 80
        %v303 = vpop.permute.xlu0 %302
        %304 = vrot.lane.b32.xlu0 %v177, 80
        %v305 = vpop.permute.xlu0 %304
        %306 = vrot.lane.b32.xlu0 %v179, 80
        %v307 = vpop.permute.xlu0 %306
        %308 = vrot.lane.b32.xlu0 %v181, 80
        %v309 = vpop.permute.xlu0 %308
        %v314 = vsel %vm238, %v291, 0
        %v316 = vsel %vm238, %v292, 0
        %v318 = vsel %vm238, %v293, 0
        %v320 = vsel %vm238, %v294, 0
        %v322 = vsel %vm238, %v297, 0
        %324 = vmatpush.msra.mxu0 0.0
        %325 = vmatpush.msra.mxu0 0.0
        %326 = vmatpush.msra.mxu0 0.0
        %327 = vmatpush.msra.mxu0 0.0
        %328 = vmatpush.msra.mxu0 0.0
        %329 = vmatpush.msra.mxu0 0.0
        %330 = vmatpush.msra.mxu0 0.0
        %331 = vmatpush.msra.mxu0 0.0
        %332 = vmatpush.msra.mxu0 0.0
        %333 = vmatpush.msra.mxu0 0.0
        %334 = vmatpush.msra.mxu0 0.0
        %335 = vmatpush.msra.mxu0 0.0
        %336 = vmatpush.msra.mxu0 %v309
        %337 = vmatpush.msra.mxu0 %v307
        %338 = vmatpush.msra.mxu0 %v305
        %339 = vmatpush.msra.mxu0 %v303
        %340 = vmatmul.f32.gmra.mxu0 %v314
        %v341 = vpop.f32.mrf.mxu0
        %v342 = vadd.f32 0.0, %v341
        %343 = vmatmul.f32.gmra.mxu0 %v316
        %v344 = vpop.f32.mrf.mxu0
        %v345 = vadd.f32 0.0, %v344
        %346 = vmatmul.f32.gmra.mxu0 %v318
        %v347 = vpop.f32.mrf.mxu0
        %v348 = vadd.f32 0.0, %v347
        %349 = vmatmul.f32.gmra.mxu0 %v320
        %v350 = vpop.f32.mrf.mxu0
        %v351 = vadd.f32 0.0, %v350
        %352 = vmatmul.f32.gmra.mxu0 %v322
        %v353 = vpop.f32.mrf.mxu0
        %v354 = vadd.f32 0.0, %v353
        %355 = vdwg.mxu0
        %v361 = vrot.slane %v342, 4
        %v362 = vrot.slane %v345, 4
        %v363 = vrot.slane %v348, 4
        %v364 = vrot.slane %v351, 4
        %v365 = vrot.slane %v354, 4
        %vm366 = vcmask 1046528
        %v367 = vrot.slane %v225, 1
        %v368 = vrot.slane %v215, 1
        %v369 = vsel %vm366, %v367, %v368
        %v370 = vrot.slane %v227, 1
        %v371 = vsel %vm366, %v368, %v370
        %v372 = vrot.slane %v226, 1
        %v373 = vrot.slane %v218, 1
        %v374 = vsel %vm366, %v372, %v373
        %v375 = vrot.slane %v228, 1
        %v376 = vsel %vm366, %v373, %v375
        %vm381 = vcmask 1045504
        %v382 = vrot.slane %v225, 2
        %v383 = vrot.slane %v215, 2
        %v384 = vsel %vm381, %v382, %v383
        %v385 = vrot.slane %v227, 2
        %v386 = vsel %vm381, %v383, %v385
        %v387 = vrot.slane %v226, 2
        %v388 = vrot.slane %v218, 2
        %v389 = vsel %vm381, %v387, %v388
        %v390 = vrot.slane %v228, 2
        %v391 = vsel %vm381, %v388, %v390
        %vm396 = vcmask 1044480
        %v397 = vrot.slane %v225, 3
        %v398 = vrot.slane %v215, 3
        %v399 = vsel %vm396, %v397, %v398
        %v400 = vrot.slane %v227, 3
        %v401 = vsel %vm396, %v398, %v400
        %v402 = vrot.slane %v226, 3
        %v403 = vrot.slane %v218, 3
        %v404 = vsel %vm396, %v402, %v403
        %v405 = vrot.slane %v228, 3
        %v406 = vsel %vm396, %v403, %v405
        %vm411 = vcmask 1043456
        %v412 = vsel %vm411, %v233, %v234
        %v413 = vrot.slane %v227, 4
        %v414 = vsel %vm411, %v234, %v413
        %v415 = vsel %vm411, %v235, %v236
        %v416 = vrot.slane %v228, 4
        %v417 = vsel %vm411, %v236, %v416
        %422 = vst [vmem:[#allocation1] ss:$2 sm:$0xff] %v342
        %s423 = scalar_lea.vmem [#allocation1], 1
        %424 = vst [vmem:[%s423] ss:$2 sm:$0xff] %v361
        %s425 = scalar_lea.vmem [#allocation1], 16
        %426 = vst [vmem:[%s425] ss:$2 sm:$0xff] %v345
        %s427 = scalar_lea.vmem [#allocation1], 17
        %428 = vst [vmem:[%s427] ss:$2 sm:$0xff] %v362
        %v429 = vld.sshfl [vmem:[#allocation1] sm:$0xff pattern:$0x75316420]
        %v430 = vld.sshfl [vmem:[#allocation1 + $0x10] sm:$0xff pattern:$0x75316420]
        %s431 = scalar_lea.vmem [#allocation1], 32
        %432 = vst [vmem:[%s431] ss:$2 sm:$0xff] %v363
        %s433 = scalar_lea.vmem [#allocation1], 33
        %434 = vst [vmem:[%s433] ss:$2 sm:$0xff] %v351
        %s435 = scalar_lea.vmem [#allocation1], 48
        %436 = vst [vmem:[%s435] ss:$2 sm:$0xff] %v364
        %s437 = scalar_lea.vmem [#allocation1], 49
        %438 = vst [vmem:[%s437] ss:$2 sm:$0xff] %v354
        %v439 = vld.sshfl [vmem:[#allocation1 + $0x20] sm:$0xff pattern:$0x75316420]
        %v440 = vld.sshfl [vmem:[#allocation1 + $0x30] sm:$0xff pattern:$0x75316420]
        %441 = vrot.lane.b32.xlu0 %v429, 16
        %v442 = vpop.permute.xlu0 %441
        %443 = vrot.lane.b32.xlu0 %v430, 16
        %v444 = vpop.permute.xlu0 %443
        %445 = vrot.lane.b32.xlu0 %v439, 16
        %v446 = vpop.permute.xlu0 %445
        %447 = vrot.lane.b32.xlu0 %v440, 16
        %v448 = vpop.permute.xlu0 %447
        %v453 = vadd.f32 %v265, %v442
        %v454 = vadd.f32 %v268, %v444
        %v455 = vadd.f32 %v271, %v446
        %v456 = vadd.f32 %v274, %v448
        %457 = vst [vmem:[#allocation1] ss:$2 sm:$0xff] %v342
        %s458 = scalar_lea.vmem [#allocation1], 1
        %459 = vst [vmem:[%s458] ss:$2 sm:$0xff] %v361
        %s460 = scalar_lea.vmem [#allocation1], 16
        %461 = vst [vmem:[%s460] ss:$2 sm:$0xff] %v345
        %s462 = scalar_lea.vmem [#allocation1], 17
        %463 = vst [vmem:[%s462] ss:$2 sm:$0xff] %v362
        %s464 = scalar_lea.vmem [#allocation1], 32
        %465 = vst [vmem:[%s464] ss:$2 sm:$0xff] %v348
        %v466 = vld.sshfl [vmem:[#allocation1] sm:$0xff pattern:$0x75316420]
        %v467 = vld.sshfl [vmem:[#allocation1 + $0x10] sm:$0xff pattern:$0x75316420]
        %v468 = vld.sshfl [vmem:[#allocation1 + $0x20] sm:$0xff pattern:$0x75316420]
        %s469 = scalar_lea.vmem [#allocation1], 48
        %470 = vst [vmem:[%s469] ss:$2 sm:$0xff] %v363
        %s471 = scalar_lea.vmem [#allocation1], 49
        %472 = vst [vmem:[%s471] ss:$2 sm:$0xff] %v351
        %v473 = vld.sshfl [vmem:[#allocation1 + $0x30] sm:$0xff pattern:$0x75316420]
        %474 = vst [vmem:[#allocation1] ss:$2 sm:$0xff] %v364
        %475 = vst [vmem:[%s458] ss:$2 sm:$0xff] %v354
        %476 = vst [vmem:[%s460] ss:$2 sm:$0xff] %v365
        %v477 = vld.sshfl [vmem:[#allocation1] sm:$0xff pattern:$0x75316420]
        %v478 = vld.sshfl [vmem:[#allocation1 + $0x10] sm:$0xff pattern:$0x75316420]
        %v479 = vrot.slane %v466, 1
        %v480 = vrot.slane %v467, 1
        %v481 = vsel %vm366, %v479, %v480
        %v482 = vrot.slane %v468, 1
        %v483 = vsel %vm366, %v480, %v482
        %v484 = vrot.slane %v473, 1
        %v485 = vrot.slane %v477, 1
        %v486 = vsel %vm366, %v484, %v485
        %v487 = vrot.slane %v478, 1
        %v488 = vsel %vm366, %v485, %v487
        %489 = vrot.lane.b32.xlu0 %v481, 16
        %v490 = vpop.permute.xlu0 %489
        %491 = vrot.lane.b32.xlu0 %v483, 16
        %v492 = vpop.permute.xlu0 %491
        %493 = vrot.lane.b32.xlu0 %v486, 16
        %v494 = vpop.permute.xlu0 %493
        %495 = vrot.lane.b32.xlu0 %v488, 16
        %v496 = vpop.permute.xlu0 %495
        %v501 = vadd.f32 %v265, %v490
        %v502 = vadd.f32 %v268, %v492
        %v503 = vadd.f32 %v271, %v494
        %v504 = vadd.f32 %v274, %v496
        %505 = vst [vmem:[#allocation1] ss:$2 sm:$0xff] %v342
        %s506 = scalar_lea.vmem [#allocation1], 1
        %507 = vst [vmem:[%s506] ss:$2 sm:$0xff] %v361
        %s508 = scalar_lea.vmem [#allocation1], 16
        %509 = vst [vmem:[%s508] ss:$2 sm:$0xff] %v345
        %s510 = scalar_lea.vmem [#allocation1], 17
        %511 = vst [vmem:[%s510] ss:$2 sm:$0xff] %v362
        %s512 = scalar_lea.vmem [#allocation1], 32
        %513 = vst [vmem:[%s512] ss:$2 sm:$0xff] %v348
        %v514 = vld.sshfl [vmem:[#allocation1] sm:$0xff pattern:$0x75316420]
        %v515 = vld.sshfl [vmem:[#allocation1 + $0x10] sm:$0xff pattern:$0x75316420]
        %v516 = vld.sshfl [vmem:[#allocation1 + $0x20] sm:$0xff pattern:$0x75316420]
        %s517 = scalar_lea.vmem [#allocation1], 48
        %518 = vst [vmem:[%s517] ss:$2 sm:$0xff] %v363
        %s519 = scalar_lea.vmem [#allocation1], 49
        %520 = vst [vmem:[%s519] ss:$2 sm:$0xff] %v351
        %v521 = vld.sshfl [vmem:[#allocation1 + $0x30] sm:$0xff pattern:$0x75316420]
        %522 = vst [vmem:[#allocation1] ss:$2 sm:$0xff] %v364
        %523 = vst [vmem:[%s506] ss:$2 sm:$0xff] %v354
        %524 = vst [vmem:[%s508] ss:$2 sm:$0xff] %v365
        %v525 = vld.sshfl [vmem:[#allocation1] sm:$0xff pattern:$0x75316420]
        %v526 = vld.sshfl [vmem:[#allocation1 + $0x10] sm:$0xff pattern:$0x75316420]
        %v527 = vrot.slane %v514, 2
        %v528 = vrot.slane %v515, 2
        %v529 = vsel %vm381, %v527, %v528
        %v530 = vrot.slane %v516, 2
        %v531 = vsel %vm381, %v528, %v530
        %v532 = vrot.slane %v521, 2
        %v533 = vrot.slane %v525, 2
        %v534 = vsel %vm381, %v532, %v533
        %v535 = vrot.slane %v526, 2
        %v536 = vsel %vm381, %v533, %v535
        %537 = vrot.lane.b32.xlu0 %v529, 16
        %v538 = vpop.permute.xlu0 %537
        %539 = vrot.lane.b32.xlu0 %v531, 16
        %v540 = vpop.permute.xlu0 %539
        %541 = vrot.lane.b32.xlu0 %v534, 16
        %v542 = vpop.permute.xlu0 %541
        %543 = vrot.lane.b32.xlu0 %v536, 16
        %v544 = vpop.permute.xlu0 %543
        %v549 = vadd.f32 %v265, %v538
        %v550 = vadd.f32 %v268, %v540
        %v551 = vadd.f32 %v271, %v542
        %v552 = vadd.f32 %v274, %v544
        %553 = vst [vmem:[#allocation1] ss:$2 sm:$0xff] %v342
        %s554 = scalar_lea.vmem [#allocation1], 1
        %555 = vst [vmem:[%s554] ss:$2 sm:$0xff] %v361
        %s556 = scalar_lea.vmem [#allocation1], 16
        %557 = vst [vmem:[%s556] ss:$2 sm:$0xff] %v345
        %s558 = scalar_lea.vmem [#allocation1], 17
        %559 = vst [vmem:[%s558] ss:$2 sm:$0xff] %v362
        %s560 = scalar_lea.vmem [#allocation1], 32
        %561 = vst [vmem:[%s560] ss:$2 sm:$0xff] %v348
        %v562 = vld.sshfl [vmem:[#allocation1] sm:$0xff pattern:$0x75316420]
        %v563 = vld.sshfl [vmem:[#allocation1 + $0x10] sm:$0xff pattern:$0x75316420]
        %v564 = vld.sshfl [vmem:[#allocation1 + $0x20] sm:$0xff pattern:$0x75316420]
        %s565 = scalar_lea.vmem [#allocation1], 48
        %566 = vst [vmem:[%s565] ss:$2 sm:$0xff] %v363
        %s567 = scalar_lea.vmem [#allocation1], 49
        %568 = vst [vmem:[%s567] ss:$2 sm:$0xff] %v351
        %v569 = vld.sshfl [vmem:[#allocation1 + $0x30] sm:$0xff pattern:$0x75316420]
        %570 = vst [vmem:[#allocation1] ss:$2 sm:$0xff] %v364
        %571 = vst [vmem:[%s554] ss:$2 sm:$0xff] %v354
        %572 = vst [vmem:[%s556] ss:$2 sm:$0xff] %v365
        %v573 = vld.sshfl [vmem:[#allocation1] sm:$0xff pattern:$0x75316420]
        %v574 = vld.sshfl [vmem:[#allocation1 + $0x10] sm:$0xff pattern:$0x75316420]
        %v575 = vrot.slane %v562, 3
        %v576 = vrot.slane %v563, 3
        %v577 = vsel %vm396, %v575, %v576
        %v578 = vrot.slane %v564, 3
        %v579 = vsel %vm396, %v576, %v578
        %v580 = vrot.slane %v569, 3
        %v581 = vrot.slane %v573, 3
        %v582 = vsel %vm396, %v580, %v581
        %v583 = vrot.slane %v574, 3
        %v584 = vsel %vm396, %v581, %v583
        %585 = vrot.lane.b32.xlu0 %v577, 16
        %v586 = vpop.permute.xlu0 %585
        %587 = vrot.lane.b32.xlu0 %v579, 16
        %v588 = vpop.permute.xlu0 %587
        %589 = vrot.lane.b32.xlu0 %v582, 16
        %v590 = vpop.permute.xlu0 %589
        %591 = vrot.lane.b32.xlu0 %v584, 16
        %v592 = vpop.permute.xlu0 %591
        %v597 = vadd.f32 %v265, %v586
        %v598 = vadd.f32 %v268, %v588
        %v599 = vadd.f32 %v271, %v590
        %v600 = vadd.f32 %v274, %v592
        %601 = vst [vmem:[#allocation1] ss:$2 sm:$0xff] %v361
        %s602 = scalar_lea.vmem [#allocation1], 1
        %603 = vst [vmem:[%s602] ss:$2 sm:$0xff] %v345
        %s604 = scalar_lea.vmem [#allocation1], 16
        %605 = vst [vmem:[%s604] ss:$2 sm:$0xff] %v362
        %s606 = scalar_lea.vmem [#allocation1], 17
        %607 = vst [vmem:[%s606] ss:$2 sm:$0xff] %v348
        %v608 = vld.sshfl [vmem:[#allocation1] sm:$0xff pattern:$0x75316420]
        %v609 = vld.sshfl [vmem:[#allocation1 + $0x10] sm:$0xff pattern:$0x75316420]
        %s610 = scalar_lea.vmem [#allocation1], 32
        %611 = vst [vmem:[%s610] ss:$2 sm:$0xff] %v351
        %s612 = scalar_lea.vmem [#allocation1], 33
        %613 = vst [vmem:[%s612] ss:$2 sm:$0xff] %v364
        %s614 = scalar_lea.vmem [#allocation1], 48
        %615 = vst [vmem:[%s614] ss:$2 sm:$0xff] %v354
        %s616 = scalar_lea.vmem [#allocation1], 49
        %617 = vst [vmem:[%s616] ss:$2 sm:$0xff] %v365
        %v618 = vld.sshfl [vmem:[#allocation1 + $0x20] sm:$0xff pattern:$0x75316420]
        %v619 = vld.sshfl [vmem:[#allocation1 + $0x30] sm:$0xff pattern:$0x75316420]
        %620 = vrot.lane.b32.xlu0 %v608, 16
        %v621 = vpop.permute.xlu0 %620
        %622 = vrot.lane.b32.xlu0 %v609, 16
        %v623 = vpop.permute.xlu0 %622
        %624 = vrot.lane.b32.xlu0 %v618, 16
        %v625 = vpop.permute.xlu0 %624
        %626 = vrot.lane.b32.xlu0 %v619, 16
        %v627 = vpop.permute.xlu0 %626
        %v632 = vadd.f32 %v265, %v621
        %v633 = vadd.f32 %v268, %v623
        %v634 = vadd.f32 %v271, %v625
        %v635 = vadd.f32 %v274, %v627
        %640 = vrot.lane.b32.xlu0 %v453, 112
        %v641 = vpop.permute.xlu0 %640
        %642 = vrot.lane.b32.xlu0 %v454, 112
        %v643 = vpop.permute.xlu0 %642
        %644 = vrot.lane.b32.xlu0 %v455, 112
        %v645 = vpop.permute.xlu0 %644
        %646 = vrot.lane.b32.xlu0 %v456, 112
        %v647 = vpop.permute.xlu0 %646
        %656 = vrot.lane.b32.xlu0 %v501, 16
        %v657 = vpop.permute.xlu0 %656
        %658 = vrot.lane.b32.xlu0 %v502, 16
        %v659 = vpop.permute.xlu0 %658
        %660 = vrot.lane.b32.xlu0 %v503, 16
        %v661 = vpop.permute.xlu0 %660
        %662 = vrot.lane.b32.xlu0 %v504, 16
        %v663 = vpop.permute.xlu0 %662
        %672 = vrot.lane.b32.xlu0 %v549, 48
        %v673 = vpop.permute.xlu0 %672
        %674 = vrot.lane.b32.xlu0 %v550, 48
        %v675 = vpop.permute.xlu0 %674
        %676 = vrot.lane.b32.xlu0 %v551, 48
        %v677 = vpop.permute.xlu0 %676
        %678 = vrot.lane.b32.xlu0 %v552, 48
        %v679 = vpop.permute.xlu0 %678
        %688 = vrot.lane.b32.xlu0 %v597, 80
        %v689 = vpop.permute.xlu0 %688
        %690 = vrot.lane.b32.xlu0 %v598, 80
        %v691 = vpop.permute.xlu0 %690
        %692 = vrot.lane.b32.xlu0 %v599, 80
        %v693 = vpop.permute.xlu0 %692
        %694 = vrot.lane.b32.xlu0 %v600, 80
        %v695 = vpop.permute.xlu0 %694
        %704 = vrot.lane.b32.xlu0 %v632, 112
        %v705 = vpop.permute.xlu0 %704
        %706 = vrot.lane.b32.xlu0 %v633, 112
        %v707 = vpop.permute.xlu0 %706
        %708 = vrot.lane.b32.xlu0 %v634, 112
        %v709 = vpop.permute.xlu0 %708
        %710 = vrot.lane.b32.xlu0 %v635, 112
        %v711 = vpop.permute.xlu0 %710
        %v716 = vsel %vm238, %v641, %v657
        %v717 = vsel %vm238, %v643, %v659
        %v718 = vsel %vm238, %v645, %v661
        %v719 = vsel %vm238, %v647, %v663
        %vm720 = vcmask 523264
        %v721 = vsel %vm720, %v716, %v673
        %v722 = vsel %vm720, %v717, %v675
        %v723 = vsel %vm720, %v718, %v677
        %v724 = vsel %vm720, %v719, %v679
        %vm725 = vcmask 785408
        %v726 = vsel %vm725, %v721, %v689
        %v727 = vsel %vm725, %v722, %v691
        %v728 = vsel %vm725, %v723, %v693
        %v729 = vsel %vm725, %v724, %v695
        %v730 = vtanh.pop %v726
        %v731 = vtanh.pop %v705
        %v732 = vtanh.pop %v727
        %v733 = vtanh.pop %v707
        %v734 = vtanh.pop %v728
        %v735 = vtanh.pop %v709
        %v736 = vtanh.pop %v729
        %v737 = vtanh.pop %v711
        %v739 = vsel %vm238, %v731, 0
        %v742 = vsel %vm238, %v733, 0
        %v745 = vsel %vm238, %v735, 0
        %v748 = vsel %vm238, %v737, 0
        %750 = vmatpush.msra.mxu0 %v199
        %751 = vmatpush.msra.mxu0 %v198
        %752 = vmatpush.msra.mxu0 %v197
        %753 = vmatpush.msra.mxu0 %v196
        %754 = vmatpush.msra.mxu0 %v195
        %755 = vmatpush.msra.mxu0 %v194
        %756 = vmatpush.msra.mxu0 %v193
        %757 = vmatpush.msra.mxu0 %v192
        %758 = vmatpush.msra.mxu0 %v191
        %759 = vmatpush.msra.mxu0 %v190
        %760 = vmatpush.msra.mxu0 %v189
        %761 = vmatpush.msra.mxu0 %v188
        %762 = vmatpush.msra.mxu0 %v187
        %763 = vmatpush.msra.mxu0 %v186
        %764 = vmatpush.msra.mxu0 %v185
        %765 = vmatpush.msra.mxu0 %v184
        %766 = vmatmul.f32.gmra.mxu0 %v730
        %v767 = vpop.f32.mrf.mxu0
        %v768 = vadd.f32 0.0, %v767
        %769 = vmatmul.f32.gmra.mxu0 %v732
        %v770 = vpop.f32.mrf.mxu0
        %v771 = vadd.f32 0.0, %v770
        %772 = vmatmul.f32.gmra.mxu0 %v734
        %v773 = vpop.f32.mrf.mxu0
        %v774 = vadd.f32 0.0, %v773
        %775 = vmatmul.f32.gmra.mxu0 %v736
        %v776 = vpop.f32.mrf.mxu0
        %v777 = vadd.f32 0.0, %v776
        %778 = vdwg.mxu0
        %779 = vmatpush.msra.mxu0 0.0
        %780 = vmatpush.msra.mxu0 0.0
        %781 = vmatpush.msra.mxu0 0.0
        %782 = vmatpush.msra.mxu0 0.0
        %783 = vmatpush.msra.mxu0 0.0
        %784 = vmatpush.msra.mxu0 0.0
        %785 = vmatpush.msra.mxu0 0.0
        %786 = vmatpush.msra.mxu0 0.0
        %787 = vmatpush.msra.mxu0 0.0
        %788 = vmatpush.msra.mxu0 0.0
        %789 = vmatpush.msra.mxu0 0.0
        %790 = vmatpush.msra.mxu0 0.0
        %791 = vmatpush.msra.mxu0 %v203
        %792 = vmatpush.msra.mxu0 %v202
        %793 = vmatpush.msra.mxu0 %v201
        %794 = vmatpush.msra.mxu0 %v200
        %795 = vmatmul.f32.gmra.mxu0 %v739
        %v796 = vpop.f32.mrf.mxu0
        %v797 = vadd.f32 %v768, %v796
        %798 = vmatmul.f32.gmra.mxu0 %v742
        %v799 = vpop.f32.mrf.mxu0
        %v800 = vadd.f32 %v771, %v799
        %801 = vmatmul.f32.gmra.mxu0 %v745
        %v802 = vpop.f32.mrf.mxu0
        %v803 = vadd.f32 %v774, %v802
        %804 = vmatmul.f32.gmra.mxu0 %v748
        %v805 = vpop.f32.mrf.mxu0
        %v806 = vadd.f32 %v777, %v805
        %807 = vdwg.mxu0
        %vm808 = vcmask 39936
        %v809 = vsel %vm808, %v797, -inf
        %810 = vmax.xlane.f32.xlu0 %v809
        %v811 = vpop.xlane.xlu0 %810
        %v812 = vsel %vm808, %v800, -inf
        %813 = vmax.xlane.f32.xlu0 %v812
        %v814 = vpop.xlane.xlu0 %813
        %v815 = vsel %vm808, %v803, -inf
        %816 = vmax.xlane.f32.xlu0 %v815
        %v817 = vpop.xlane.xlu0 %816
        %v818 = vsel %vm808, %v806, -inf
        %819 = vmax.xlane.f32.xlu0 %v818
        %v820 = vpop.xlane.xlu0 %819
        %v821 = vsub.f32 %v797, %v811
        %v822 = vsub.f32 %v800, %v814
        %v823 = vsub.f32 %v803, %v817
        %v824 = vsub.f32 %v806, %v820
        %v825 = vmul.f32 %v821, 1.442695
        %v826 = vpow.pop %v825
        %v827 = vmul.f32 %v822, 1.442695
        %v828 = vpow.pop %v827
        %v829 = vmul.f32 %v823, 1.442695
        %v830 = vpow.pop %v829
        %v831 = vmul.f32 %v824, 1.442695
        %v832 = vpow.pop %v831
        %v833 = vsel %vm808, %v826, 0.0
        %834 = vadd.xlane.f32.xlu0 %v833
        %v835 = vpop.xlane.xlu0 %834
        %v836 = vsel %vm808, %v828, 0.0
        %837 = vadd.xlane.f32.xlu0 %v836
        %v838 = vpop.xlane.xlu0 %837
        %v839 = vsel %vm808, %v830, 0.0
        %840 = vadd.xlane.f32.xlu0 %v839
        %v841 = vpop.xlane.xlu0 %840
        %v842 = vsel %vm808, %v832, 0.0
        %843 = vadd.xlane.f32.xlu0 %v842
        %v844 = vpop.xlane.xlu0 %843
        %v845 = vrcp.pop %v835
        %v846 = vmul.f32 %v835, %v845
        %v847 = vsub.f32 1.0, %v846
        %v848 = vmul.f32 %v845, %v847
        %v849 = vadd.f32 %v845, %v848
        %vm850 = vweird.f32 %v835
        %vm851 = vweird.f32 %v845
        %vm852 = vmor %vm850, %vm851
        %v853 = vsel %vm852, %v845, %v849
        %v854 = vand.u32 2147483647, %v835
        %vm855 = vcmp.eq.f32.partialorder %v854, 8.507059e+37
        %v856 = vand.u32 %v835, 2147483648
        %v857 = vor.u32 1.1754944e-38, %v856
        %v858 = vsel %vm855, %v857, %v853
        %v859 = vrcp.pop %v838
        %v860 = vmul.f32 %v838, %v859
        %v861 = vsub.f32 1.0, %v860
        %v862 = vmul.f32 %v859, %v861
        %v863 = vadd.f32 %v859, %v862
        %vm864 = vweird.f32 %v838
        %vm865 = vweird.f32 %v859
        %vm866 = vmor %vm864, %vm865
        %v867 = vsel %vm866, %v859, %v863
        %v868 = vand.u32 2147483647, %v838
        %vm869 = vcmp.eq.f32.partialorder %v868, 8.507059e+37
        %v870 = vand.u32 %v838, 2147483648
        %v871 = vor.u32 1.1754944e-38, %v870
        %v872 = vsel %vm869, %v871, %v867
        %v873 = vrcp.pop %v841
        %v874 = vmul.f32 %v841, %v873
        %v875 = vsub.f32 1.0, %v874
        %v876 = vmul.f32 %v873, %v875
        %v877 = vadd.f32 %v873, %v876
        %vm878 = vweird.f32 %v841
        %vm879 = vweird.f32 %v873
        %vm880 = vmor %vm878, %vm879
        %v881 = vsel %vm880, %v873, %v877
        %v882 = vand.u32 2147483647, %v841
        %vm883 = vcmp.eq.f32.partialorder %v882, 8.507059e+37
        %v884 = vand.u32 %v841, 2147483648
        %v885 = vor.u32 1.1754944e-38, %v884
        %v886 = vsel %vm883, %v885, %v881
        %v887 = vrcp.pop %v844
        %v888 = vmul.f32 %v844, %v887
        %v889 = vsub.f32 1.0, %v888
        %v890 = vmul.f32 %v887, %v889
        %v891 = vadd.f32 %v887, %v890
        %vm892 = vweird.f32 %v844
        %vm893 = vweird.f32 %v887
        %vm894 = vmor %vm892, %vm893
        %v895 = vsel %vm894, %v887, %v891
        %v896 = vand.u32 2147483647, %v844
        %vm897 = vcmp.eq.f32.partialorder %v896, 8.507059e+37
        %v898 = vand.u32 %v844, 2147483648
        %v899 = vor.u32 1.1754944e-38, %v898
        %v900 = vsel %vm897, %v899, %v895
        %v901 = vmul.f32 %v826, %v858
        %v902 = vmul.f32 %v828, %v872
        %v903 = vmul.f32 %v830, %v886
        %v904 = vmul.f32 %v832, %v900
        %906 = vset.pattern.permute.xlu0 0
        %907 = vperm.xlu0 %906, %v901
        %v908 = vpop.permute.xlu0 %907
        %911 = vset.pattern.permute.xlu0 0
        %912 = vperm.xlu0 %911, %v902
        %v913 = vpop.permute.xlu0 %912
        %916 = vset.pattern.permute.xlu0 0
        %917 = vperm.xlu0 %916, %v903
        %v918 = vpop.permute.xlu0 %917
        %921 = vset.pattern.permute.xlu0 0
        %922 = vperm.xlu0 %921, %v904
        %v923 = vpop.permute.xlu0 %922
        %v925 = vmul.f32 %v908, %v225
        %v926 = vmul.f32 %v913, %v215
        %v927 = vmul.f32 %v918, %v226
        %v928 = vmul.f32 %v923, %v218
        %929 = vset.pattern.permute.xlu0 1
        %930 = vperm.xlu0 %929, %v901
        %v931 = vpop.permute.xlu0 %930
        %933 = vset.pattern.permute.xlu0 1
        %934 = vperm.xlu0 %933, %v902
        %v935 = vpop.permute.xlu0 %934
        %937 = vset.pattern.permute.xlu0 1
        %938 = vperm.xlu0 %937, %v903
        %v939 = vpop.permute.xlu0 %938
        %941 = vset.pattern.permute.xlu0 1
        %942 = vperm.xlu0 %941, %v904
        %v943 = vpop.permute.xlu0 %942
        %v945 = vmul.f32 %v931, %v369
        %v946 = vmul.f32 %v935, %v371
        %v947 = vmul.f32 %v939, %v374
        %v948 = vmul.f32 %v943, %v376
        %v949 = vadd.f32 %v925, %v945
        %v950 = vadd.f32 %v926, %v946
        %v951 = vadd.f32 %v927, %v947
        %v952 = vadd.f32 %v928, %v948
        %953 = vset.pattern.permute.xlu0 2
        %954 = vperm.xlu0 %953, %v901
        %v955 = vpop.permute.xlu0 %954
        %957 = vset.pattern.permute.xlu0 2
        %958 = vperm.xlu0 %957, %v902
        %v959 = vpop.permute.xlu0 %958
        %961 = vset.pattern.permute.xlu0 2
        %962 = vperm.xlu0 %961, %v903
        %v963 = vpop.permute.xlu0 %962
        %965 = vset.pattern.permute.xlu0 2
        %966 = vperm.xlu0 %965, %v904
        %v967 = vpop.permute.xlu0 %966
        %v969 = vmul.f32 %v955, %v384
        %v970 = vmul.f32 %v959, %v386
        %v971 = vmul.f32 %v963, %v389
        %v972 = vmul.f32 %v967, %v391
        %v973 = vadd.f32 %v949, %v969
        %v974 = vadd.f32 %v950, %v970
        %v975 = vadd.f32 %v951, %v971
        %v976 = vadd.f32 %v952, %v972
        %977 = vset.pattern.permute.xlu0 3
        %978 = vperm.xlu0 %977, %v901
        %v979 = vpop.permute.xlu0 %978
        %981 = vset.pattern.permute.xlu0 3
        %982 = vperm.xlu0 %981, %v902
        %v983 = vpop.permute.xlu0 %982
        %985 = vset.pattern.permute.xlu0 3
        %986 = vperm.xlu0 %985, %v903
        %v987 = vpop.permute.xlu0 %986
        %989 = vset.pattern.permute.xlu0 3
        %990 = vperm.xlu0 %989, %v904
        %v991 = vpop.permute.xlu0 %990
        %v993 = vmul.f32 %v979, %v399
        %v994 = vmul.f32 %v983, %v401
        %v995 = vmul.f32 %v987, %v404
        %v996 = vmul.f32 %v991, %v406
        %v997 = vadd.f32 %v973, %v993
        %v998 = vadd.f32 %v974, %v994
        %v999 = vadd.f32 %v975, %v995
        %v1000 = vadd.f32 %v976, %v996
        %1001 = vset.pattern.permute.xlu0 4
        %1002 = vperm.xlu0 %1001, %v901
        %v1003 = vpop.permute.xlu0 %1002
        %1005 = vset.pattern.permute.xlu0 4
        %1006 = vperm.xlu0 %1005, %v902
        %v1007 = vpop.permute.xlu0 %1006
        %1009 = vset.pattern.permute.xlu0 4
        %1010 = vperm.xlu0 %1009, %v903
        %v1011 = vpop.permute.xlu0 %1010
        %1013 = vset.pattern.permute.xlu0 4
        %1014 = vperm.xlu0 %1013, %v904
        %v1015 = vpop.permute.xlu0 %1014
        %v1017 = vmul.f32 %v1003, %v412
        %v1018 = vmul.f32 %v1007, %v414
        %v1019 = vmul.f32 %v1011, %v415
        %v1020 = vmul.f32 %v1015, %v417
        %v1021 = vadd.f32 %v997, %v1017
        %v1022 = vadd.f32 %v998, %v1018
        %v1023 = vadd.f32 %v999, %v1019
        %v1024 = vadd.f32 %v1000, %v1020
        %1029 = vrot.lane.b32.xlu0 %v176, 96
        %v1030 = vpop.permute.xlu0 %1029
        %1031 = vrot.lane.b32.xlu0 %v178, 96
        %v1032 = vpop.permute.xlu0 %1031
        %1033 = vrot.lane.b32.xlu0 %v180, 96
        %v1034 = vpop.permute.xlu0 %1033
        %1035 = vrot.lane.b32.xlu0 %v182, 96
        %v1036 = vpop.permute.xlu0 %1035
        %1042 = vrot.lane.b32.xlu0 %v237, 32
        %v1043 = vpop.permute.xlu0 %1042
        %v1046 = vsel %vm238, %v1021, 0
        %v1049 = vsel %vm238, %v1022, 0
        %v1052 = vsel %vm238, %v1023, 0
        %v1055 = vsel %vm238, %v1024, 0
        %1057 = vmatpush.msra.mxu0 0.0
        %1058 = vmatpush.msra.mxu0 0.0
        %1059 = vmatpush.msra.mxu0 0.0
        %1060 = vmatpush.msra.mxu0 0.0
        %1061 = vmatpush.msra.mxu0 0.0
        %1062 = vmatpush.msra.mxu0 0.0
        %1063 = vmatpush.msra.mxu0 0.0
        %1064 = vmatpush.msra.mxu0 0.0
        %1065 = vmatpush.msra.mxu0 0.0
        %1066 = vmatpush.msra.mxu0 0.0
        %1067 = vmatpush.msra.mxu0 0.0
        %1068 = vmatpush.msra.mxu0 0.0
        %1069 = vmatpush.msra.mxu0 %v1036
        %1070 = vmatpush.msra.mxu0 %v1034
        %1071 = vmatpush.msra.mxu0 %v1032
        %1072 = vmatpush.msra.mxu0 %v1030
        %1073 = vmatmul.f32.gmra.mxu0 %v1046
        %v1074 = vpop.f32.mrf.mxu0
        %v1075 = vadd.f32 %v1043, %v1074
        %1076 = vmatmul.f32.gmra.mxu0 %v1049
        %v1077 = vpop.f32.mrf.mxu0
        %v1078 = vadd.f32 %v1043, %v1077
        %1079 = vmatmul.f32.gmra.mxu0 %v1052
        %v1080 = vpop.f32.mrf.mxu0
        %v1081 = vadd.f32 %v1043, %v1080
        %1082 = vmatmul.f32.gmra.mxu0 %v1055
        %v1083 = vpop.f32.mrf.mxu0
        %v1084 = vadd.f32 %v1043, %v1083
        %1085 = vdwg.mxu0
        %v1086 = vxor.u32 %v1075, 2147483648
        %v1087 = vxor.u32 %v1078, 2147483648
        %v1088 = vxor.u32 %v1081, 2147483648
        %v1089 = vxor.u32 %v1084, 2147483648
        %v1090 = vmul.f32 %v1086, 1.442695
        %v1091 = vpow.pop %v1090
        %v1092 = vmul.f32 %v1087, 1.442695
        %v1093 = vpow.pop %v1092
        %v1094 = vmul.f32 %v1088, 1.442695
        %v1095 = vpow.pop %v1094
        %v1096 = vmul.f32 %v1089, 1.442695
        %v1097 = vpow.pop %v1096
        %v1098 = vadd.f32 %v1091, 1.0
        %v1099 = vadd.f32 %v1093, 1.0
        %v1100 = vadd.f32 %v1095, 1.0
        %v1101 = vadd.f32 %v1097, 1.0
        %v1102 = vrcp.pop %v1098
        %v1103 = vmul.f32 %v1098, %v1102
        %v1104 = vsub.f32 1.0, %v1103
        %v1105 = vmul.f32 %v1102, %v1104
        %v1106 = vadd.f32 %v1102, %v1105
        %vm1107 = vweird.f32 %v1098
        %vm1108 = vweird.f32 %v1102
        %vm1109 = vmor %vm1107, %vm1108
        %v1110 = vsel %vm1109, %v1102, %v1106
        %v1111 = vand.u32 2147483647, %v1098
        %vm1112 = vcmp.eq.f32.partialorder %v1111, 8.507059e+37
        %v1113 = vand.u32 %v1098, 2147483648
        %v1114 = vor.u32 1.1754944e-38, %v1113
        %v1115 = vsel %vm1112, %v1114, %v1110
        %v1116 = vmul.f32 1.0, %v1115
        %v1117 = vrcp.pop %v1099
        %v1118 = vmul.f32 %v1099, %v1117
        %v1119 = vsub.f32 1.0, %v1118
        %v1120 = vmul.f32 %v1117, %v1119
        %v1121 = vadd.f32 %v1117, %v1120
        %vm1122 = vweird.f32 %v1099
        %vm1123 = vweird.f32 %v1117
        %vm1124 = vmor %vm1122, %vm1123
        %v1125 = vsel %vm1124, %v1117, %v1121
        %v1126 = vand.u32 2147483647, %v1099
        %vm1127 = vcmp.eq.f32.partialorder %v1126, 8.507059e+37
        %v1128 = vand.u32 %v1099, 2147483648
        %v1129 = vor.u32 1.1754944e-38, %v1128
        %v1130 = vsel %vm1127, %v1129, %v1125
        %v1131 = vmul.f32 1.0, %v1130
        %v1132 = vrcp.pop %v1100
        %v1133 = vmul.f32 %v1100, %v1132
        %v1134 = vsub.f32 1.0, %v1133
        %v1135 = vmul.f32 %v1132, %v1134
        %v1136 = vadd.f32 %v1132, %v1135
        %vm1137 = vweird.f32 %v1100
        %vm1138 = vweird.f32 %v1132
        %vm1139 = vmor %vm1137, %vm1138
        %v1140 = vsel %vm1139, %v1132, %v1136
        %v1141 = vand.u32 2147483647, %v1100
        %vm1142 = vcmp.eq.f32.partialorder %v1141, 8.507059e+37
        %v1143 = vand.u32 %v1100, 2147483648
        %v1144 = vor.u32 1.1754944e-38, %v1143
        %v1145 = vsel %vm1142, %v1144, %v1140
        %v1146 = vmul.f32 1.0, %v1145
        %v1147 = vrcp.pop %v1101
        %v1148 = vmul.f32 %v1101, %v1147
        %v1149 = vsub.f32 1.0, %v1148
        %v1150 = vmul.f32 %v1147, %v1149
        %v1151 = vadd.f32 %v1147, %v1150
        %vm1152 = vweird.f32 %v1101
        %vm1153 = vweird.f32 %v1147
        %vm1154 = vmor %vm1152, %vm1153
        %v1155 = vsel %vm1154, %v1147, %v1151
        %v1156 = vand.u32 2147483647, %v1101
        %vm1157 = vcmp.eq.f32.partialorder %v1156, 8.507059e+37
        %v1158 = vand.u32 %v1101, 2147483648
        %v1159 = vor.u32 1.1754944e-38, %v1158
        %v1160 = vsel %vm1157, %v1159, %v1155
        %v1161 = vmul.f32 1.0, %v1160
        %1166 = vrot.lane.b32.xlu0 %v1116, 16
        %v1167 = vpop.permute.xlu0 %1166
        %1168 = vrot.lane.b32.xlu0 %v1131, 16
        %v1169 = vpop.permute.xlu0 %1168
        %1170 = vrot.lane.b32.xlu0 %v1146, 16
        %v1171 = vpop.permute.xlu0 %1170
        %1172 = vrot.lane.b32.xlu0 %v1161, 16
        %v1173 = vpop.permute.xlu0 %1172
        %vm1178 = vcmask 130048
        %v1179 = vsel %vm1178, %v265, %v1167
        %v1180 = vsel %vm1178, %v268, %v1169
        %v1181 = vsel %vm1178, %v271, %v1171
        %v1182 = vsel %vm1178, %v274, %v1173
        %1183 = vrot.lane.b32.xlu0 %v175, 16
        %v1184 = vpop.permute.xlu0 %1183
        %1185 = vrot.lane.b32.xlu0 %v176, 16
        %v1186 = vpop.permute.xlu0 %1185
        %1187 = vrot.lane.b32.xlu0 %v177, 16
        %v1188 = vpop.permute.xlu0 %1187
        %1189 = vrot.lane.b32.xlu0 %v178, 16
        %v1190 = vpop.permute.xlu0 %1189
        %1191 = vrot.lane.b32.xlu0 %v179, 16
        %v1192 = vpop.permute.xlu0 %1191
        %1193 = vrot.lane.b32.xlu0 %v180, 16
        %v1194 = vpop.permute.xlu0 %1193
        %1195 = vrot.lane.b32.xlu0 %v181, 16
        %v1196 = vpop.permute.xlu0 %1195
        %1197 = vrot.lane.b32.xlu0 %v182, 16
        %v1198 = vpop.permute.xlu0 %1197
        %v1199 = vsel %vm1178, %v1184, %v1186
        %v1200 = vsel %vm1178, %v1188, %v1190
        %v1201 = vsel %vm1178, %v1192, %v1194
        %v1202 = vsel %vm1178, %v1196, %v1198
        %1207 = vrot.lane.b32.xlu0 %v237, 80
        %v1208 = vpop.permute.xlu0 %1207
        %v1211 = vsel %vm238, %v1179, 0
        %v1214 = vsel %vm238, %v1180, 0
        %v1217 = vsel %vm238, %v1181, 0
        %v1220 = vsel %vm238, %v1182, 0
        %1222 = vmatpush.msra.mxu0 0.0
        %1223 = vmatpush.msra.mxu0 0.0
        %1224 = vmatpush.msra.mxu0 0.0
        %1225 = vmatpush.msra.mxu0 0.0
        %1226 = vmatpush.msra.mxu0 0.0
        %1227 = vmatpush.msra.mxu0 0.0
        %1228 = vmatpush.msra.mxu0 0.0
        %1229 = vmatpush.msra.mxu0 0.0
        %1230 = vmatpush.msra.mxu0 0.0
        %1231 = vmatpush.msra.mxu0 0.0
        %1232 = vmatpush.msra.mxu0 0.0
        %1233 = vmatpush.msra.mxu0 0.0
        %1234 = vmatpush.msra.mxu0 %v1202
        %1235 = vmatpush.msra.mxu0 %v1201
        %1236 = vmatpush.msra.mxu0 %v1200
        %1237 = vmatpush.msra.mxu0 %v1199
        %1238 = vmatmul.f32.gmra.mxu0 %v1211
        %v1239 = vpop.f32.mrf.mxu0
        %v1240 = vadd.f32 %v1208, %v1239
        %1241 = vmatmul.f32.gmra.mxu0 %v1214
        %v1242 = vpop.f32.mrf.mxu0
        %v1243 = vadd.f32 %v1208, %v1242
        %1244 = vmatmul.f32.gmra.mxu0 %v1217
        %v1245 = vpop.f32.mrf.mxu0
        %v1246 = vadd.f32 %v1208, %v1245
        %1247 = vmatmul.f32.gmra.mxu0 %v1220
        %v1248 = vpop.f32.mrf.mxu0
        %v1249 = vadd.f32 %v1208, %v1248
        %1250 = vdwg.mxu0
        %1251 = vst [vmem:[#allocation1] ss:$2 sm:$0xff] %v342
        %s1252 = scalar_lea.vmem [#allocation1], 1
        %1253 = vst [vmem:[%s1252] ss:$2 sm:$0xff] %v361
        %s1254 = scalar_lea.vmem [#allocation1], 16
        %1255 = vst [vmem:[%s1254] ss:$2 sm:$0xff] %v345
        %s1256 = scalar_lea.vmem [#allocation1], 17
        %1257 = vst [vmem:[%s1256] ss:$2 sm:$0xff] %v362
        %v1258 = vld.sshfl [vmem:[#allocation1] sm:$0xff pattern:$0x75316420]
        %v1259 = vld.sshfl [vmem:[#allocation1 + $0x10] sm:$0xff pattern:$0x75316420]
        %s1260 = scalar_lea.vmem [#allocation1], 32
        %1261 = vst [vmem:[%s1260] ss:$2 sm:$0xff] %v363
        %s1262 = scalar_lea.vmem [#allocation1], 33
        %1263 = vst [vmem:[%s1262] ss:$2 sm:$0xff] %v351
        %s1264 = scalar_lea.vmem [#allocation1], 48
        %1265 = vst [vmem:[%s1264] ss:$2 sm:$0xff] %v364
        %s1266 = scalar_lea.vmem [#allocation1], 49
        %1267 = vst [vmem:[%s1266] ss:$2 sm:$0xff] %v354
        %v1268 = vld.sshfl [vmem:[#allocation1 + $0x20] sm:$0xff pattern:$0x75316420]
        %v1269 = vld.sshfl [vmem:[#allocation1 + $0x30] sm:$0xff pattern:$0x75316420]
        %1270 = vrot.lane.b32.xlu0 %v1258, 96
        %v1271 = vpop.permute.xlu0 %1270
        %1272 = vrot.lane.b32.xlu0 %v1259, 96
        %v1273 = vpop.permute.xlu0 %1272
        %1274 = vrot.lane.b32.xlu0 %v1268, 96
        %v1275 = vpop.permute.xlu0 %1274
        %1276 = vrot.lane.b32.xlu0 %v1269, 96
        %v1277 = vpop.permute.xlu0 %1276
        %v1282 = vadd.f32 %v1240, %v1271
        %v1283 = vadd.f32 %v1243, %v1273
        %v1284 = vadd.f32 %v1246, %v1275
        %v1285 = vadd.f32 %v1249, %v1277
        %1286 = vst [vmem:[#allocation1] ss:$2 sm:$0xff] %v342
        %s1287 = scalar_lea.vmem [#allocation1], 1
        %1288 = vst [vmem:[%s1287] ss:$2 sm:$0xff] %v361
        %s1289 = scalar_lea.vmem [#allocation1], 16
        %1290 = vst [vmem:[%s1289] ss:$2 sm:$0xff] %v345
        %s1291 = scalar_lea.vmem [#allocation1], 17
        %1292 = vst [vmem:[%s1291] ss:$2 sm:$0xff] %v362
        %s1293 = scalar_lea.vmem [#allocation1], 32
        %1294 = vst [vmem:[%s1293] ss:$2 sm:$0xff] %v348
        %v1295 = vld.sshfl [vmem:[#allocation1] sm:$0xff pattern:$0x75316420]
        %v1296 = vld.sshfl [vmem:[#allocation1 + $0x10] sm:$0xff pattern:$0x75316420]
        %v1297 = vld.sshfl [vmem:[#allocation1 + $0x20] sm:$0xff pattern:$0x75316420]
        %s1298 = scalar_lea.vmem [#allocation1], 48
        %1299 = vst [vmem:[%s1298] ss:$2 sm:$0xff] %v363
        %s1300 = scalar_lea.vmem [#allocation1], 49
        %1301 = vst [vmem:[%s1300] ss:$2 sm:$0xff] %v351
        %v1302 = vld.sshfl [vmem:[#allocation1 + $0x30] sm:$0xff pattern:$0x75316420]
        %1303 = vst [vmem:[#allocation1] ss:$2 sm:$0xff] %v364
        %1304 = vst [vmem:[%s1287] ss:$2 sm:$0xff] %v354
        %1305 = vst [vmem:[%s1289] ss:$2 sm:$0xff] %v365
        %v1306 = vld.sshfl [vmem:[#allocation1] sm:$0xff pattern:$0x75316420]
        %v1307 = vld.sshfl [vmem:[#allocation1 + $0x10] sm:$0xff pattern:$0x75316420]
        %v1308 = vrot.slane %v1295, 1
        %v1309 = vrot.slane %v1296, 1
        %v1310 = vsel %vm366, %v1308, %v1309
        %v1311 = vrot.slane %v1297, 1
        %v1312 = vsel %vm366, %v1309, %v1311
        %v1313 = vrot.slane %v1302, 1
        %v1314 = vrot.slane %v1306, 1
        %v1315 = vsel %vm366, %v1313, %v1314
        %v1316 = vrot.slane %v1307, 1
        %v1317 = vsel %vm366, %v1314, %v1316
        %1318 = vrot.lane.b32.xlu0 %v1310, 96
        %v1319 = vpop.permute.xlu0 %1318
        %1320 = vrot.lane.b32.xlu0 %v1312, 96
        %v1321 = vpop.permute.xlu0 %1320
        %1322 = vrot.lane.b32.xlu0 %v1315, 96
        %v1323 = vpop.permute.xlu0 %1322
        %1324 = vrot.lane.b32.xlu0 %v1317, 96
        %v1325 = vpop.permute.xlu0 %1324
        %v1330 = vadd.f32 %v1240, %v1319
        %v1331 = vadd.f32 %v1243, %v1321
        %v1332 = vadd.f32 %v1246, %v1323
        %v1333 = vadd.f32 %v1249, %v1325
        %1334 = vst [vmem:[#allocation1] ss:$2 sm:$0xff] %v342
        %s1335 = scalar_lea.vmem [#allocation1], 1
        %1336 = vst [vmem:[%s1335] ss:$2 sm:$0xff] %v361
        %s1337 = scalar_lea.vmem [#allocation1], 16
        %1338 = vst [vmem:[%s1337] ss:$2 sm:$0xff] %v345
        %s1339 = scalar_lea.vmem [#allocation1], 17
        %1340 = vst [vmem:[%s1339] ss:$2 sm:$0xff] %v362
        %s1341 = scalar_lea.vmem [#allocation1], 32
        %1342 = vst [vmem:[%s1341] ss:$2 sm:$0xff] %v348
        %v1343 = vld.sshfl [vmem:[#allocation1] sm:$0xff pattern:$0x75316420]
        %v1344 = vld.sshfl [vmem:[#allocation1 + $0x10] sm:$0xff pattern:$0x75316420]
        %v1345 = vld.sshfl [vmem:[#allocation1 + $0x20] sm:$0xff pattern:$0x75316420]
        %s1346 = scalar_lea.vmem [#allocation1], 48
        %1347 = vst [vmem:[%s1346] ss:$2 sm:$0xff] %v363
        %s1348 = scalar_lea.vmem [#allocation1], 49
        %1349 = vst [vmem:[%s1348] ss:$2 sm:$0xff] %v351
        %v1350 = vld.sshfl [vmem:[#allocation1 + $0x30] sm:$0xff pattern:$0x75316420]
        %1351 = vst [vmem:[#allocation1] ss:$2 sm:$0xff] %v364
        %1352 = vst [vmem:[%s1335] ss:$2 sm:$0xff] %v354
        %1353 = vst [vmem:[%s1337] ss:$2 sm:$0xff] %v365
        %v1354 = vld.sshfl [vmem:[#allocation1] sm:$0xff pattern:$0x75316420]
        %v1355 = vld.sshfl [vmem:[#allocation1 + $0x10] sm:$0xff pattern:$0x75316420]
        %v1356 = vrot.slane %v1343, 2
        %v1357 = vrot.slane %v1344, 2
        %v1358 = vsel %vm381, %v1356, %v1357
        %v1359 = vrot.slane %v1345, 2
        %v1360 = vsel %vm381, %v1357, %v1359
        %v1361 = vrot.slane %v1350, 2
        %v1362 = vrot.slane %v1354, 2
        %v1363 = vsel %vm381, %v1361, %v1362
        %v1364 = vrot.slane %v1355, 2
        %v1365 = vsel %vm381, %v1362, %v1364
        %1366 = vrot.lane.b32.xlu0 %v1358, 96
        %v1367 = vpop.permute.xlu0 %1366
        %1368 = vrot.lane.b32.xlu0 %v1360, 96
        %v1369 = vpop.permute.xlu0 %1368
        %1370 = vrot.lane.b32.xlu0 %v1363, 96
        %v1371 = vpop.permute.xlu0 %1370
        %1372 = vrot.lane.b32.xlu0 %v1365, 96
        %v1373 = vpop.permute.xlu0 %1372
        %v1378 = vadd.f32 %v1240, %v1367
        %v1379 = vadd.f32 %v1243, %v1369
        %v1380 = vadd.f32 %v1246, %v1371
        %v1381 = vadd.f32 %v1249, %v1373
        %1382 = vst [vmem:[#allocation1] ss:$2 sm:$0xff] %v342
        %s1383 = scalar_lea.vmem [#allocation1], 1
        %1384 = vst [vmem:[%s1383] ss:$2 sm:$0xff] %v361
        %s1385 = scalar_lea.vmem [#allocation1], 16
        %1386 = vst [vmem:[%s1385] ss:$2 sm:$0xff] %v345
        %s1387 = scalar_lea.vmem [#allocation1], 17
        %1388 = vst [vmem:[%s1387] ss:$2 sm:$0xff] %v362
        %s1389 = scalar_lea.vmem [#allocation1], 32
        %1390 = vst [vmem:[%s1389] ss:$2 sm:$0xff] %v348
        %v1391 = vld.sshfl [vmem:[#allocation1] sm:$0xff pattern:$0x75316420]
        %v1392 = vld.sshfl [vmem:[#allocation1 + $0x10] sm:$0xff pattern:$0x75316420]
        %v1393 = vld.sshfl [vmem:[#allocation1 + $0x20] sm:$0xff pattern:$0x75316420]
        %s1394 = scalar_lea.vmem [#allocation1], 48
        %1395 = vst [vmem:[%s1394] ss:$2 sm:$0xff] %v363
        %s1396 = scalar_lea.vmem [#allocation1], 49
        %1397 = vst [vmem:[%s1396] ss:$2 sm:$0xff] %v351
        %v1398 = vld.sshfl [vmem:[#allocation1 + $0x30] sm:$0xff pattern:$0x75316420]
        %1399 = vst [vmem:[#allocation1] ss:$2 sm:$0xff] %v364
        %1400 = vst [vmem:[%s1383] ss:$2 sm:$0xff] %v354
        %1401 = vst [vmem:[%s1385] ss:$2 sm:$0xff] %v365
        %v1402 = vld.sshfl [vmem:[#allocation1] sm:$0xff pattern:$0x75316420]
        %v1403 = vld.sshfl [vmem:[#allocation1 + $0x10] sm:$0xff pattern:$0x75316420]
        %v1404 = vrot.slane %v1391, 3
        %v1405 = vrot.slane %v1392, 3
        %v1406 = vsel %vm396, %v1404, %v1405
        %v1407 = vrot.slane %v1393, 3
        %v1408 = vsel %vm396, %v1405, %v1407
        %v1409 = vrot.slane %v1398, 3
        %v1410 = vrot.slane %v1402, 3
        %v1411 = vsel %vm396, %v1409, %v1410
        %v1412 = vrot.slane %v1403, 3
        %v1413 = vsel %vm396, %v1410, %v1412
        %1414 = vrot.lane.b32.xlu0 %v1406, 96
        %v1415 = vpop.permute.xlu0 %1414
        %1416 = vrot.lane.b32.xlu0 %v1408, 96
        %v1417 = vpop.permute.xlu0 %1416
        %1418 = vrot.lane.b32.xlu0 %v1411, 96
        %v1419 = vpop.permute.xlu0 %1418
        %1420 = vrot.lane.b32.xlu0 %v1413, 96
        %v1421 = vpop.permute.xlu0 %1420
        %v1426 = vadd.f32 %v1240, %v1415
        %v1427 = vadd.f32 %v1243, %v1417
        %v1428 = vadd.f32 %v1246, %v1419
        %v1429 = vadd.f32 %v1249, %v1421
        %1430 = vst [vmem:[#allocation1] ss:$2 sm:$0xff] %v361
        %s1431 = scalar_lea.vmem [#allocation1], 1
        %1432 = vst [vmem:[%s1431] ss:$2 sm:$0xff] %v345
        %s1433 = scalar_lea.vmem [#allocation1], 16
        %1434 = vst [vmem:[%s1433] ss:$2 sm:$0xff] %v362
        %s1435 = scalar_lea.vmem [#allocation1], 17
        %1436 = vst [vmem:[%s1435] ss:$2 sm:$0xff] %v348
        %v1437 = vld.sshfl [vmem:[#allocation1] sm:$0xff pattern:$0x75316420]
        %v1438 = vld.sshfl [vmem:[#allocation1 + $0x10] sm:$0xff pattern:$0x75316420]
        %s1439 = scalar_lea.vmem [#allocation1], 32
        %1440 = vst [vmem:[%s1439] ss:$2 sm:$0xff] %v351
        %s1441 = scalar_lea.vmem [#allocation1], 33
        %1442 = vst [vmem:[%s1441] ss:$2 sm:$0xff] %v364
        %s1443 = scalar_lea.vmem [#allocation1], 48
        %1444 = vst [vmem:[%s1443] ss:$2 sm:$0xff] %v354
        %s1445 = scalar_lea.vmem [#allocation1], 49
        %1446 = vst [vmem:[%s1445] ss:$2 sm:$0xff] %v365
        %v1447 = vld.sshfl [vmem:[#allocation1 + $0x20] sm:$0xff pattern:$0x75316420]
        %v1448 = vld.sshfl [vmem:[#allocation1 + $0x30] sm:$0xff pattern:$0x75316420]
        %1449 = vrot.lane.b32.xlu0 %v1437, 96
        %v1450 = vpop.permute.xlu0 %1449
        %1451 = vrot.lane.b32.xlu0 %v1438, 96
        %v1452 = vpop.permute.xlu0 %1451
        %1453 = vrot.lane.b32.xlu0 %v1447, 96
        %v1454 = vpop.permute.xlu0 %1453
        %1455 = vrot.lane.b32.xlu0 %v1448, 96
        %v1456 = vpop.permute.xlu0 %1455
        %v1461 = vadd.f32 %v1240, %v1450
        %v1462 = vadd.f32 %v1243, %v1452
        %v1463 = vadd.f32 %v1246, %v1454
        %v1464 = vadd.f32 %v1249, %v1456
        %1469 = vrot.lane.b32.xlu0 %v1330, 32
        %v1470 = vpop.permute.xlu0 %1469
        %1471 = vrot.lane.b32.xlu0 %v1331, 32
        %v1472 = vpop.permute.xlu0 %1471
        %1473 = vrot.lane.b32.xlu0 %v1332, 32
        %v1474 = vpop.permute.xlu0 %1473
        %1475 = vrot.lane.b32.xlu0 %v1333, 32
        %v1476 = vpop.permute.xlu0 %1475
        %1485 = vrot.lane.b32.xlu0 %v1378, 64
        %v1486 = vpop.permute.xlu0 %1485
        %1487 = vrot.lane.b32.xlu0 %v1379, 64
        %v1488 = vpop.permute.xlu0 %1487
        %1489 = vrot.lane.b32.xlu0 %v1380, 64
        %v1490 = vpop.permute.xlu0 %1489
        %1491 = vrot.lane.b32.xlu0 %v1381, 64
        %v1492 = vpop.permute.xlu0 %1491
        %1501 = vrot.lane.b32.xlu0 %v1426, 96
        %v1502 = vpop.permute.xlu0 %1501
        %1503 = vrot.lane.b32.xlu0 %v1427, 96
        %v1504 = vpop.permute.xlu0 %1503
        %1505 = vrot.lane.b32.xlu0 %v1428, 96
        %v1506 = vpop.permute.xlu0 %1505
        %1507 = vrot.lane.b32.xlu0 %v1429, 96
        %v1508 = vpop.permute.xlu0 %1507
        %v1513 = vsel %vm238, %v1282, %v1470
        %v1514 = vsel %vm238, %v1283, %v1472
        %v1515 = vsel %vm238, %v1284, %v1474
        %v1516 = vsel %vm238, %v1285, %v1476
        %v1517 = vsel %vm720, %v1513, %v1486
        %v1518 = vsel %vm720, %v1514, %v1488
        %v1519 = vsel %vm720, %v1515, %v1490
        %v1520 = vsel %vm720, %v1516, %v1492
        %v1521 = vsel %vm725, %v1517, %v1502
        %v1522 = vsel %vm725, %v1518, %v1504
        %v1523 = vsel %vm725, %v1519, %v1506
        %v1524 = vsel %vm725, %v1520, %v1508
        %v1525 = vtanh.pop %v1521
        %v1526 = vtanh.pop %v1461
        %v1527 = vtanh.pop %v1522
        %v1528 = vtanh.pop %v1462
        %v1529 = vtanh.pop %v1523
        %v1530 = vtanh.pop %v1463
        %v1531 = vtanh.pop %v1524
        %v1532 = vtanh.pop %v1464
        %1553 = vrot.lane.b32.xlu0 %v184, 123
        %v1554 = vpop.permute.xlu0 %1553
        %1555 = vrot.lane.b32.xlu0 %v185, 123
        %v1556 = vpop.permute.xlu0 %1555
        %1557 = vrot.lane.b32.xlu0 %v186, 123
        %v1558 = vpop.permute.xlu0 %1557
        %1559 = vrot.lane.b32.xlu0 %v187, 123
        %v1560 = vpop.permute.xlu0 %1559
        %1561 = vrot.lane.b32.xlu0 %v188, 123
        %v1562 = vpop.permute.xlu0 %1561
        %1563 = vrot.lane.b32.xlu0 %v189, 123
        %v1564 = vpop.permute.xlu0 %1563
        %1565 = vrot.lane.b32.xlu0 %v190, 123
        %v1566 = vpop.permute.xlu0 %1565
        %1567 = vrot.lane.b32.xlu0 %v191, 123
        %v1568 = vpop.permute.xlu0 %1567
        %1569 = vrot.lane.b32.xlu0 %v192, 123
        %v1570 = vpop.permute.xlu0 %1569
        %1571 = vrot.lane.b32.xlu0 %v193, 123
        %v1572 = vpop.permute.xlu0 %1571
        %1573 = vrot.lane.b32.xlu0 %v194, 123
        %v1574 = vpop.permute.xlu0 %1573
        %1575 = vrot.lane.b32.xlu0 %v195, 123
        %v1576 = vpop.permute.xlu0 %1575
        %1577 = vrot.lane.b32.xlu0 %v196, 123
        %v1578 = vpop.permute.xlu0 %1577
        %1579 = vrot.lane.b32.xlu0 %v197, 123
        %v1580 = vpop.permute.xlu0 %1579
        %1581 = vrot.lane.b32.xlu0 %v198, 123
        %v1582 = vpop.permute.xlu0 %1581
        %1583 = vrot.lane.b32.xlu0 %v199, 123
        %v1584 = vpop.permute.xlu0 %1583
        %1585 = vrot.lane.b32.xlu0 %v200, 123
        %v1586 = vpop.permute.xlu0 %1585
        %1587 = vrot.lane.b32.xlu0 %v201, 123
        %v1588 = vpop.permute.xlu0 %1587
        %1589 = vrot.lane.b32.xlu0 %v202, 123
        %v1590 = vpop.permute.xlu0 %1589
        %1591 = vrot.lane.b32.xlu0 %v203, 123
        %v1592 = vpop.permute.xlu0 %1591
        %v1614 = vsel %vm238, %v1526, 0
        %v1617 = vsel %vm238, %v1528, 0
        %v1620 = vsel %vm238, %v1530, 0
        %v1623 = vsel %vm238, %v1532, 0
        %1625 = vmatpush.msra.mxu0 %v1584
        %1626 = vmatpush.msra.mxu0 %v1582
        %1627 = vmatpush.msra.mxu0 %v1580
        %1628 = vmatpush.msra.mxu0 %v1578
        %1629 = vmatpush.msra.mxu0 %v1576
        %1630 = vmatpush.msra.mxu0 %v1574
        %1631 = vmatpush.msra.mxu0 %v1572
        %1632 = vmatpush.msra.mxu0 %v1570
        %1633 = vmatpush.msra.mxu0 %v1568
        %1634 = vmatpush.msra.mxu0 %v1566
        %1635 = vmatpush.msra.mxu0 %v1564
        %1636 = vmatpush.msra.mxu0 %v1562
        %1637 = vmatpush.msra.mxu0 %v1560
        %1638 = vmatpush.msra.mxu0 %v1558
        %1639 = vmatpush.msra.mxu0 %v1556
        %1640 = vmatpush.msra.mxu0 %v1554
        %1641 = vmatmul.f32.gmra.mxu0 %v1525
        %v1642 = vpop.f32.mrf.mxu0
        %v1643 = vadd.f32 0.0, %v1642
        %1644 = vmatmul.f32.gmra.mxu0 %v1527
        %v1645 = vpop.f32.mrf.mxu0
        %v1646 = vadd.f32 0.0, %v1645
        %1647 = vmatmul.f32.gmra.mxu0 %v1529
        %v1648 = vpop.f32.mrf.mxu0
        %v1649 = vadd.f32 0.0, %v1648
        %1650 = vmatmul.f32.gmra.mxu0 %v1531
        %v1651 = vpop.f32.mrf.mxu0
        %v1652 = vadd.f32 0.0, %v1651
        %1653 = vdwg.mxu0
        %1654 = vmatpush.msra.mxu0 0.0
        %1655 = vmatpush.msra.mxu0 0.0
        %1656 = vmatpush.msra.mxu0 0.0
        %1657 = vmatpush.msra.mxu0 0.0
        %1658 = vmatpush.msra.mxu0 0.0
        %1659 = vmatpush.msra.mxu0 0.0
        %1660 = vmatpush.msra.mxu0 0.0
        %1661 = vmatpush.msra.mxu0 0.0
        %1662 = vmatpush.msra.mxu0 0.0
        %1663 = vmatpush.msra.mxu0 0.0
        %1664 = vmatpush.msra.mxu0 0.0
        %1665 = vmatpush.msra.mxu0 0.0
        %1666 = vmatpush.msra.mxu0 %v1592
        %1667 = vmatpush.msra.mxu0 %v1590
        %1668 = vmatpush.msra.mxu0 %v1588
        %1669 = vmatpush.msra.mxu0 %v1586
        %1670 = vmatmul.f32.gmra.mxu0 %v1614
        %v1671 = vpop.f32.mrf.mxu0
        %v1672 = vadd.f32 %v1643, %v1671
        %1673 = vmatmul.f32.gmra.mxu0 %v1617
        %v1674 = vpop.f32.mrf.mxu0
        %v1675 = vadd.f32 %v1646, %v1674
        %1676 = vmatmul.f32.gmra.mxu0 %v1620
        %v1677 = vpop.f32.mrf.mxu0
        %v1678 = vadd.f32 %v1649, %v1677
        %1679 = vmatmul.f32.gmra.mxu0 %v1623
        %v1680 = vpop.f32.mrf.mxu0
        %v1681 = vadd.f32 %v1652, %v1680
        %1682 = vdwg.mxu0
        %v1683 = vsel %vm808, %v1672, -inf
        %1684 = vmax.xlane.f32.xlu0 %v1683
        %v1685 = vpop.xlane.xlu0 %1684
        %v1686 = vsel %vm808, %v1675, -inf
        %1687 = vmax.xlane.f32.xlu0 %v1686
        %v1688 = vpop.xlane.xlu0 %1687
        %v1689 = vsel %vm808, %v1678, -inf
        %1690 = vmax.xlane.f32.xlu0 %v1689
        %v1691 = vpop.xlane.xlu0 %1690
        %v1692 = vsel %vm808, %v1681, -inf
        %1693 = vmax.xlane.f32.xlu0 %v1692
        %v1694 = vpop.xlane.xlu0 %1693
        %v1695 = vsub.f32 %v1672, %v1685
        %v1696 = vsub.f32 %v1675, %v1688
        %v1697 = vsub.f32 %v1678, %v1691
        %v1698 = vsub.f32 %v1681, %v1694
        %v1699 = vmul.f32 %v1695, 1.442695
        %v1700 = vpow.pop %v1699
        %v1701 = vmul.f32 %v1696, 1.442695
        %v1702 = vpow.pop %v1701
        %v1703 = vmul.f32 %v1697, 1.442695
        %v1704 = vpow.pop %v1703
        %v1705 = vmul.f32 %v1698, 1.442695
        %v1706 = vpow.pop %v1705
        %v1707 = vsel %vm808, %v1700, 0.0
        %1708 = vadd.xlane.f32.xlu0 %v1707
        %v1709 = vpop.xlane.xlu0 %1708
        %v1710 = vsel %vm808, %v1702, 0.0
        %1711 = vadd.xlane.f32.xlu0 %v1710
        %v1712 = vpop.xlane.xlu0 %1711
        %v1713 = vsel %vm808, %v1704, 0.0
        %1714 = vadd.xlane.f32.xlu0 %v1713
        %v1715 = vpop.xlane.xlu0 %1714
        %v1716 = vsel %vm808, %v1706, 0.0
        %1717 = vadd.xlane.f32.xlu0 %v1716
        %v1718 = vpop.xlane.xlu0 %1717
        %v1719 = vrcp.pop %v1709
        %v1720 = vmul.f32 %v1709, %v1719
        %v1721 = vsub.f32 1.0, %v1720
        %v1722 = vmul.f32 %v1719, %v1721
        %v1723 = vadd.f32 %v1719, %v1722
        %vm1724 = vweird.f32 %v1709
        %vm1725 = vweird.f32 %v1719
        %vm1726 = vmor %vm1724, %vm1725
        %v1727 = vsel %vm1726, %v1719, %v1723
        %v1728 = vand.u32 2147483647, %v1709
        %vm1729 = vcmp.eq.f32.partialorder %v1728, 8.507059e+37
        %v1730 = vand.u32 %v1709, 2147483648
        %v1731 = vor.u32 1.1754944e-38, %v1730
        %v1732 = vsel %vm1729, %v1731, %v1727
        %v1733 = vrcp.pop %v1712
        %v1734 = vmul.f32 %v1712, %v1733
        %v1735 = vsub.f32 1.0, %v1734
        %v1736 = vmul.f32 %v1733, %v1735
        %v1737 = vadd.f32 %v1733, %v1736
        %vm1738 = vweird.f32 %v1712
        %vm1739 = vweird.f32 %v1733
        %vm1740 = vmor %vm1738, %vm1739
        %v1741 = vsel %vm1740, %v1733, %v1737
        %v1742 = vand.u32 2147483647, %v1712
        %vm1743 = vcmp.eq.f32.partialorder %v1742, 8.507059e+37
        %v1744 = vand.u32 %v1712, 2147483648
        %v1745 = vor.u32 1.1754944e-38, %v1744
        %v1746 = vsel %vm1743, %v1745, %v1741
        %v1747 = vrcp.pop %v1715
        %v1748 = vmul.f32 %v1715, %v1747
        %v1749 = vsub.f32 1.0, %v1748
        %v1750 = vmul.f32 %v1747, %v1749
        %v1751 = vadd.f32 %v1747, %v1750
        %vm1752 = vweird.f32 %v1715
        %vm1753 = vweird.f32 %v1747
        %vm1754 = vmor %vm1752, %vm1753
        %v1755 = vsel %vm1754, %v1747, %v1751
        %v1756 = vand.u32 2147483647, %v1715
        %vm1757 = vcmp.eq.f32.partialorder %v1756, 8.507059e+37
        %v1758 = vand.u32 %v1715, 2147483648
        %v1759 = vor.u32 1.1754944e-38, %v1758
        %v1760 = vsel %vm1757, %v1759, %v1755
        %v1761 = vrcp.pop %v1718
        %v1762 = vmul.f32 %v1718, %v1761
        %v1763 = vsub.f32 1.0, %v1762
        %v1764 = vmul.f32 %v1761, %v1763
        %v1765 = vadd.f32 %v1761, %v1764
        %vm1766 = vweird.f32 %v1718
        %vm1767 = vweird.f32 %v1761
        %vm1768 = vmor %vm1766, %vm1767
        %v1769 = vsel %vm1768, %v1761, %v1765
        %v1770 = vand.u32 2147483647, %v1718
        %vm1771 = vcmp.eq.f32.partialorder %v1770, 8.507059e+37
        %v1772 = vand.u32 %v1718, 2147483648
        %v1773 = vor.u32 1.1754944e-38, %v1772
        %v1774 = vsel %vm1771, %v1773, %v1769
        %v1775 = vmul.f32 %v1700, %v1732
        %v1776 = vmul.f32 %v1702, %v1746
        %v1777 = vmul.f32 %v1704, %v1760
        %v1778 = vmul.f32 %v1706, %v1774
        %1780 = vset.pattern.permute.xlu0 0
        %1781 = vperm.xlu0 %1780, %v1775
        %v1782 = vpop.permute.xlu0 %1781
        %1785 = vset.pattern.permute.xlu0 0
        %1786 = vperm.xlu0 %1785, %v1776
        %v1787 = vpop.permute.xlu0 %1786
        %1790 = vset.pattern.permute.xlu0 0
        %1791 = vperm.xlu0 %1790, %v1777
        %v1792 = vpop.permute.xlu0 %1791
        %1795 = vset.pattern.permute.xlu0 0
        %1796 = vperm.xlu0 %1795, %v1778
        %v1797 = vpop.permute.xlu0 %1796
        %v1799 = vmul.f32 %v1782, %v225
        %v1800 = vmul.f32 %v1787, %v215
        %v1801 = vmul.f32 %v1792, %v226
        %v1802 = vmul.f32 %v1797, %v218
        %1803 = vset.pattern.permute.xlu0 1
        %1804 = vperm.xlu0 %1803, %v1775
        %v1805 = vpop.permute.xlu0 %1804
        %1807 = vset.pattern.permute.xlu0 1
        %1808 = vperm.xlu0 %1807, %v1776
        %v1809 = vpop.permute.xlu0 %1808
        %1811 = vset.pattern.permute.xlu0 1
        %1812 = vperm.xlu0 %1811, %v1777
        %v1813 = vpop.permute.xlu0 %1812
        %1815 = vset.pattern.permute.xlu0 1
        %1816 = vperm.xlu0 %1815, %v1778
        %v1817 = vpop.permute.xlu0 %1816
        %v1819 = vmul.f32 %v1805, %v369
        %v1820 = vmul.f32 %v1809, %v371
        %v1821 = vmul.f32 %v1813, %v374
        %v1822 = vmul.f32 %v1817, %v376
        %v1823 = vadd.f32 %v1799, %v1819
        %v1824 = vadd.f32 %v1800, %v1820
        %v1825 = vadd.f32 %v1801, %v1821
        %v1826 = vadd.f32 %v1802, %v1822
        %1827 = vset.pattern.permute.xlu0 2
        %1828 = vperm.xlu0 %1827, %v1775
        %v1829 = vpop.permute.xlu0 %1828
        %1831 = vset.pattern.permute.xlu0 2
        %1832 = vperm.xlu0 %1831, %v1776
        %v1833 = vpop.permute.xlu0 %1832
        %1835 = vset.pattern.permute.xlu0 2
        %1836 = vperm.xlu0 %1835, %v1777
        %v1837 = vpop.permute.xlu0 %1836
        %1839 = vset.pattern.permute.xlu0 2
        %1840 = vperm.xlu0 %1839, %v1778
        %v1841 = vpop.permute.xlu0 %1840
        %v1843 = vmul.f32 %v1829, %v384
        %v1844 = vmul.f32 %v1833, %v386
        %v1845 = vmul.f32 %v1837, %v389
        %v1846 = vmul.f32 %v1841, %v391
        %v1847 = vadd.f32 %v1823, %v1843
        %v1848 = vadd.f32 %v1824, %v1844
        %v1849 = vadd.f32 %v1825, %v1845
        %v1850 = vadd.f32 %v1826, %v1846
        %1851 = vset.pattern.permute.xlu0 3
        %1852 = vperm.xlu0 %1851, %v1775
        %v1853 = vpop.permute.xlu0 %1852
        %1855 = vset.pattern.permute.xlu0 3
        %1856 = vperm.xlu0 %1855, %v1776
        %v1857 = vpop.permute.xlu0 %1856
        %1859 = vset.pattern.permute.xlu0 3
        %1860 = vperm.xlu0 %1859, %v1777
        %v1861 = vpop.permute.xlu0 %1860
        %1863 = vset.pattern.permute.xlu0 3
        %1864 = vperm.xlu0 %1863, %v1778
        %v1865 = vpop.permute.xlu0 %1864
        %v1867 = vmul.f32 %v1853, %v399
        %v1868 = vmul.f32 %v1857, %v401
        %v1869 = vmul.f32 %v1861, %v404
        %v1870 = vmul.f32 %v1865, %v406
        %v1871 = vadd.f32 %v1847, %v1867
        %v1872 = vadd.f32 %v1848, %v1868
        %v1873 = vadd.f32 %v1849, %v1869
        %v1874 = vadd.f32 %v1850, %v1870
        %1875 = vset.pattern.permute.xlu0 4
        %1876 = vperm.xlu0 %1875, %v1775
        %v1877 = vpop.permute.xlu0 %1876
        %1879 = vset.pattern.permute.xlu0 4
        %1880 = vperm.xlu0 %1879, %v1776
        %v1881 = vpop.permute.xlu0 %1880
        %1883 = vset.pattern.permute.xlu0 4
        %1884 = vperm.xlu0 %1883, %v1777
        %v1885 = vpop.permute.xlu0 %1884
        %1887 = vset.pattern.permute.xlu0 4
        %1888 = vperm.xlu0 %1887, %v1778
        %v1889 = vpop.permute.xlu0 %1888
        %v1891 = vmul.f32 %v1877, %v412
        %v1892 = vmul.f32 %v1881, %v414
        %v1893 = vmul.f32 %v1885, %v415
        %v1894 = vmul.f32 %v1889, %v417
        %v1895 = vadd.f32 %v1871, %v1891
        %v1896 = vadd.f32 %v1872, %v1892
        %v1897 = vadd.f32 %v1873, %v1893
        %v1898 = vadd.f32 %v1874, %v1894
        %1899 = vrot.lane.b32.xlu0 %v176, 80
        %v1900 = vpop.permute.xlu0 %1899
        %1901 = vrot.lane.b32.xlu0 %v178, 80
        %v1902 = vpop.permute.xlu0 %1901
        %1903 = vrot.lane.b32.xlu0 %v180, 80
        %v1904 = vpop.permute.xlu0 %1903
        %1905 = vrot.lane.b32.xlu0 %v182, 80
        %v1906 = vpop.permute.xlu0 %1905
        %v1912 = vsel %vm238, %v1895, 0
        %v1915 = vsel %vm238, %v1896, 0
        %v1918 = vsel %vm238, %v1897, 0
        %v1921 = vsel %vm238, %v1898, 0
        %1923 = vmatpush.msra.mxu0 0.0
        %1924 = vmatpush.msra.mxu0 0.0
        %1925 = vmatpush.msra.mxu0 0.0
        %1926 = vmatpush.msra.mxu0 0.0
        %1927 = vmatpush.msra.mxu0 0.0
        %1928 = vmatpush.msra.mxu0 0.0
        %1929 = vmatpush.msra.mxu0 0.0
        %1930 = vmatpush.msra.mxu0 0.0
        %1931 = vmatpush.msra.mxu0 0.0
        %1932 = vmatpush.msra.mxu0 0.0
        %1933 = vmatpush.msra.mxu0 0.0
        %1934 = vmatpush.msra.mxu0 0.0
        %1935 = vmatpush.msra.mxu0 %v1906
        %1936 = vmatpush.msra.mxu0 %v1904
        %1937 = vmatpush.msra.mxu0 %v1902
        %1938 = vmatpush.msra.mxu0 %v1900
        %1939 = vmatmul.f32.gmra.mxu0 %v1912
        %v1940 = vpop.f32.mrf.mxu0
        %v1941 = vadd.f32 0.0, %v1940
        %1942 = vmatmul.f32.gmra.mxu0 %v1915
        %v1943 = vpop.f32.mrf.mxu0
        %v1944 = vadd.f32 0.0, %v1943
        %1945 = vmatmul.f32.gmra.mxu0 %v1918
        %v1946 = vpop.f32.mrf.mxu0
        %v1947 = vadd.f32 0.0, %v1946
        %1948 = vmatmul.f32.gmra.mxu0 %v1921
        %v1949 = vpop.f32.mrf.mxu0
        %v1950 = vadd.f32 0.0, %v1949
        %1951 = vdwg.mxu0
        %1956 = vrot.lane.b32.xlu0 %v1941, 32
        %v1957 = vpop.permute.xlu0 %1956
        %1958 = vrot.lane.b32.xlu0 %v1944, 32
        %v1959 = vpop.permute.xlu0 %1958
        %1960 = vrot.lane.b32.xlu0 %v1947, 32
        %v1961 = vpop.permute.xlu0 %1960
        %1962 = vrot.lane.b32.xlu0 %v1950, 32
        %v1963 = vpop.permute.xlu0 %1962
        %v1968 = vadd.f32 %v1240, %v1957
        %v1969 = vadd.f32 %v1243, %v1959
        %v1970 = vadd.f32 %v1246, %v1961
        %v1971 = vadd.f32 %v1249, %v1963
        %v1972 = vxor.u32 %v1968, 2147483648
        %v1973 = vxor.u32 %v1969, 2147483648
        %v1974 = vxor.u32 %v1970, 2147483648
        %v1975 = vxor.u32 %v1971, 2147483648
        %v1976 = vmul.f32 %v1972, 1.442695
        %v1977 = vpow.pop %v1976
        %v1978 = vmul.f32 %v1973, 1.442695
        %v1979 = vpow.pop %v1978
        %v1980 = vmul.f32 %v1974, 1.442695
        %v1981 = vpow.pop %v1980
        %v1982 = vmul.f32 %v1975, 1.442695
        %v1983 = vpow.pop %v1982
        %v1984 = vadd.f32 %v1977, 1.0
        %v1985 = vadd.f32 %v1979, 1.0
        %v1986 = vadd.f32 %v1981, 1.0
        %v1987 = vadd.f32 %v1983, 1.0
        %v1988 = vrcp.pop %v1984
        %v1989 = vmul.f32 %v1984, %v1988
        %v1990 = vsub.f32 1.0, %v1989
        %v1991 = vmul.f32 %v1988, %v1990
        %v1992 = vadd.f32 %v1988, %v1991
        %vm1993 = vweird.f32 %v1984
        %vm1994 = vweird.f32 %v1988
        %vm1995 = vmor %vm1993, %vm1994
        %v1996 = vsel %vm1995, %v1988, %v1992
        %v1997 = vand.u32 2147483647, %v1984
        %vm1998 = vcmp.eq.f32.partialorder %v1997, 8.507059e+37
        %v1999 = vand.u32 %v1984, 2147483648
        %v2000 = vor.u32 1.1754944e-38, %v1999
        %v2001 = vsel %vm1998, %v2000, %v1996
        %v2002 = vmul.f32 1.0, %v2001
        %v2003 = vrcp.pop %v1985
        %v2004 = vmul.f32 %v1985, %v2003
        %v2005 = vsub.f32 1.0, %v2004
        %v2006 = vmul.f32 %v2003, %v2005
        %v2007 = vadd.f32 %v2003, %v2006
        %vm2008 = vweird.f32 %v1985
        %vm2009 = vweird.f32 %v2003
        %vm2010 = vmor %vm2008, %vm2009
        %v2011 = vsel %vm2010, %v2003, %v2007
        %v2012 = vand.u32 2147483647, %v1985
        %vm2013 = vcmp.eq.f32.partialorder %v2012, 8.507059e+37
        %v2014 = vand.u32 %v1985, 2147483648
        %v2015 = vor.u32 1.1754944e-38, %v2014
        %v2016 = vsel %vm2013, %v2015, %v2011
        %v2017 = vmul.f32 1.0, %v2016
        %v2018 = vrcp.pop %v1986
        %v2019 = vmul.f32 %v1986, %v2018
        %v2020 = vsub.f32 1.0, %v2019
        %v2021 = vmul.f32 %v2018, %v2020
        %v2022 = vadd.f32 %v2018, %v2021
        %vm2023 = vweird.f32 %v1986
        %vm2024 = vweird.f32 %v2018
        %vm2025 = vmor %vm2023, %vm2024
        %v2026 = vsel %vm2025, %v2018, %v2022
        %v2027 = vand.u32 2147483647, %v1986
        %vm2028 = vcmp.eq.f32.partialorder %v2027, 8.507059e+37
        %v2029 = vand.u32 %v1986, 2147483648
        %v2030 = vor.u32 1.1754944e-38, %v2029
        %v2031 = vsel %vm2028, %v2030, %v2026
        %v2032 = vmul.f32 1.0, %v2031
        %v2033 = vrcp.pop %v1987
        %v2034 = vmul.f32 %v1987, %v2033
        %v2035 = vsub.f32 1.0, %v2034
        %v2036 = vmul.f32 %v2033, %v2035
        %v2037 = vadd.f32 %v2033, %v2036
        %vm2038 = vweird.f32 %v1987
        %vm2039 = vweird.f32 %v2033
        %vm2040 = vmor %vm2038, %vm2039
        %v2041 = vsel %vm2040, %v2033, %v2037
        %v2042 = vand.u32 2147483647, %v1987
        %vm2043 = vcmp.eq.f32.partialorder %v2042, 8.507059e+37
        %v2044 = vand.u32 %v1987, 2147483648
        %v2045 = vor.u32 1.1754944e-38, %v2044
        %v2046 = vsel %vm2043, %v2045, %v2041
        %v2047 = vmul.f32 1.0, %v2046
        %2052 = vrot.lane.b32.xlu0 %v2002, 96
        %v2053 = vpop.permute.xlu0 %2052
        %2054 = vrot.lane.b32.xlu0 %v2017, 96
        %v2055 = vpop.permute.xlu0 %2054
        %2056 = vrot.lane.b32.xlu0 %v2032, 96
        %v2057 = vpop.permute.xlu0 %2056
        %2058 = vrot.lane.b32.xlu0 %v2047, 96
        %v2059 = vpop.permute.xlu0 %2058
        %2068 = vrot.lane.b32.xlu0 %v265, 32
        %v2069 = vpop.permute.xlu0 %2068
        %2070 = vrot.lane.b32.xlu0 %v268, 32
        %v2071 = vpop.permute.xlu0 %2070
        %2072 = vrot.lane.b32.xlu0 %v271, 32
        %v2073 = vpop.permute.xlu0 %2072
        %2074 = vrot.lane.b32.xlu0 %v274, 32
        %v2075 = vpop.permute.xlu0 %2074
        %2080 = vrot.lane.b32.xlu0 %v1775, 48
        %v2081 = vpop.permute.xlu0 %2080
        %2082 = vrot.lane.b32.xlu0 %v1776, 48
        %v2083 = vpop.permute.xlu0 %2082
        %2084 = vrot.lane.b32.xlu0 %v1777, 48
        %v2085 = vpop.permute.xlu0 %2084
        %2086 = vrot.lane.b32.xlu0 %v1778, 48
        %v2087 = vpop.permute.xlu0 %2086
        %2092 = vrot.lane.b32.xlu0 %v901, 53
        %v2093 = vpop.permute.xlu0 %2092
        %2094 = vrot.lane.b32.xlu0 %v902, 53
        %v2095 = vpop.permute.xlu0 %2094
        %2096 = vrot.lane.b32.xlu0 %v903, 53
        %v2097 = vpop.permute.xlu0 %2096
        %2098 = vrot.lane.b32.xlu0 %v904, 53
        %v2099 = vpop.permute.xlu0 %2098
        %v2104 = vsel %vm1178, %v2053, %v1167
        %v2105 = vsel %vm1178, %v2055, %v1169
        %v2106 = vsel %vm1178, %v2057, %v1171
        %v2107 = vsel %vm1178, %v2059, %v1173
        %v2108 = vsel %vm238, %v2104, %v2069
        %v2109 = vsel %vm238, %v2105, %v2071
        %v2110 = vsel %vm238, %v2106, %v2073
        %v2111 = vsel %vm238, %v2107, %v2075
        %vm2112 = vcmask 392192
        %v2113 = vsel %vm2112, %v2108, %v2081
        %v2114 = vsel %vm2112, %v2109, %v2083
        %v2115 = vsel %vm2112, %v2110, %v2085
        %v2116 = vsel %vm2112, %v2111, %v2087
        %vm2117 = vcmask 433152
        %v2118 = vsel %vm2117, %v2113, %v2093
        %v2119 = vsel %vm2117, %v2114, %v2095
        %v2120 = vsel %vm2117, %v2115, %v2097
        %v2121 = vsel %vm2117, %v2116, %v2099
        %vm2122 = vcmask 474112
        %v2123 = vsel %vm2122, %v2118, 0.0
        %v2124 = vsel %vm2122, %v2119, 0.0
        %v2125 = vsel %vm2122, %v2120, 0.0
        %v2126 = vsel %vm2122, %v2121, 0.0
        %2127 = vst [vmem:[%s166] sm:$0xff] %v2123
        %2128 = vst [vmem:[%s166 + $0x8] sm:$0xff] %v2124
        %2129 = vst [vmem:[%s166 + $0x10] sm:$0xff] %v2125
        %2130 = vst [vmem:[%s166 + $0x18] sm:$0xff] %v2126
        %s2131 = sand.u32 %s93, 1
        %s2132 = scalar_lea.sflag [#allocation3], %s2131
        %s2133 = sand.u32 %s93, 1
        %s2134 = smul.addr %s2133, 32
        %s2135 = scalar_lea.vmem [#allocation2], %s2134
        // Predicated region
        $region33: #{tpu_custom_call.1} parent=31 // pred_check
          %p2136 = pneg %p103
        $region34: #{tpu_custom_call.1} parent=31 // pred_check_branch
          %2138 = sbr.rel (%p2136) target = $region36
        $region35: #{tpu_custom_call.1} parent=31 // pred_region
          %s2139 = smul.u32 2, %s17
          %2141 = vsyncadd %s2132, 0
          %s2142 = smul.addr %s2139, 2
          %s2143 = smul.addr %s2142, 8
          %s2144 = scalar_lea.hbm %s3, %s2143
          %s2145 = sshll.u32 %s2135, 4
          %s2146 = int_to_ptr.vmem [resolvable:$true] %s2145
          %s2147 = sshll.u32 %s2144, 4
          %s2148 = int_to_ptr.hbm [resolvable:$true] %s2147
          %2153 = dma.vmem_to_hbm [thread:$0]  %s2146, 512, %s2148, %s2132, 128, 128, 8
        $region36: #{tpu_custom_call.1} parent=31 // pred_fallthru
          _
      $region32: #{tpu_custom_call.1} parent=5 // pred_fallthru
        _
      %p2154 = scmp.le.s32.totalorder 2, %s12
      // Predicated region
      $region37: #{tpu_custom_call.1} parent=5 // pred_check
        %p2155 = pneg %p2154
      $region38: #{tpu_custom_call.1} parent=5 // pred_check_branch
        %2157 = sbr.rel (%p2155) target = $region40
      $region39: #{tpu_custom_call.1} parent=5 // pred_region
        %s2158 = ssub.s32 %s12, 2
        // Predicated region
        $region41: #{tpu_custom_call.1} parent=39 // pred_check
          %p2159 = pneg %p109
        $region42: #{tpu_custom_call.1} parent=39 // pred_check_branch
          %2161 = sbr.rel (%p2159) target = $region44
        $region43: #{tpu_custom_call.1} parent=39 // pred_region
          %s2162 = sand.u32 %s94, 1
          %s2163 = scalar_lea.sflag [#allocation3], %s2162
          %s2164 = sand.u32 %s94, 1
          %s2165 = smul.addr %s2164, 32
          %s2166 = scalar_lea.vmem [#allocation2], %s2165
          %2168 = dma.done %s2163, 512
        $region44: #{tpu_custom_call.1} parent=39 // pred_fallthru
          _
      $region40: #{tpu_custom_call.1} parent=5 // pred_fallthru
        _
    $region6: #{tpu_custom_call.1} parent=1 // loop_footer
      %s16 = sadd.s32 1, %s12
    $region7: #{tpu_custom_call.1} parent=1 // loop_footer_branch
      %11 = sbr.rel target = $region3
    $region8: #{tpu_custom_call.1} parent=1 // loop_exit
      _
    %2169 = vsyncpa [#allocation3], 1
    %s2170 = scalar_lea.sflag [#allocation3], 1
    %2171 = vsyncpa %s2170, 1

</llo_original>
